<compile_context>
chip_gen: v6e
topology: v6e:2x2x1
jax: 0.10.0
libtpu: 0.0.40
codegen_flags: <defaults>
</compile_context>

<pallas_src>
from functools import partial

import jax
import jax.numpy as jnp
from jax.experimental import pallas as pl
from jax.experimental.pallas import tpu as pltpu


def _round_up(x, m):
    return ((x + m - 1) // m) * m


# --------------------------------------------------------------------------
# Fused Pallas kernel
# --------------------------------------------------------------------------

def _router_kernel(states_ref, w_in_ref, pd_wr_ref, pd_mask_ref,
                   bd_b1_ref, bd_w2_ref, bd_b2_ref,
                   rs_b1_ref, rs_w2_ref, rs_b2_ref,
                   opt_ref, scal_ref, *pat_refs,
                   pp, dp, d2p, threshold, emit_diag):
    t, S, D = states_ref.shape
    n = t * S

    x3 = states_ref[...]                                   # [t, S, D] f32
    x2 = x3.reshape(n, D)

    # ---- single MXU pass for every D-input projection ---------------------------
    # 128-lane-aligned packed columns:
    #   [0,Pp)            pattern projection (surrogate)
    #   [Pp,Pp+Dp)        bottleneck W1 half acting on s_i
    #   [Pp+Dp,Pp+2Dp)    bottleneck W1 half acting on s_{i+1}
    #   [Pp+2Dp,+D2p)     route-scorer first Linear
    # Padded columns carry zero weights, so padded lanes contribute nothing below.
    y3 = jnp.dot(x2, w_in_ref[...],
                 preferred_element_type=jnp.float32).reshape(t, S, pp + 2 * dp + d2p)

    # ---- 1) PatternDynamics surrogate -> routing scores -------------------------
    # TODO(synk): PatternDynamics is not defined in the reference source; this is a
    # deterministic surrogate (projection + softmax + linear readout) producing
    # routing_scores / pattern_scores / patterns with the shapes forward() needs.
    ps3 = y3[..., 0:pp]                                     # pattern logits (padded)
    pat3 = jax.nn.softmax(ps3 + pd_mask_ref[...], axis=-1)  # padded lanes -> ~0
    rs3 = jnp.sum(pat3 * pd_wr_ref[...], axis=-1, keepdims=True)        # [t, S, 1]

    # ---- 2) bottleneck detector on ORIGINAL adjacent pairs -----------------------
    a3 = y3[..., pp:pp + dp]                                # s_i   @ W1[:D]   (padded)
    b3 = y3[..., pp + dp:pp + 2 * dp]                       # s_i   @ W1[D:]   (padded)
    hid = jnp.maximum(a3[:, :-1, :] + b3[:, 1:, :] + bd_b1_ref[...], 0.0)
    bott3 = jax.nn.sigmoid(
        jnp.sum(hid * bd_w2_ref[...], axis=-1, keepdims=True) + bd_b2_ref[...])  # [t,S-1,1]

    # ---- 3) flow gradient (torch.gradient, edge_order=1) + impact + blend weights -
    fwd0 = rs3[:, 1:2, :] - rs3[:, 0:1, :]
    central = (rs3[:, 2:, :] - rs3[:, :-2, :]) * 0.5
    flow3 = jnp.concatenate([fwd0, central], axis=1)        # flow[..., :-1]   [t,S-1,1]
    impact3 = jnp.where(bott3 > threshold, flow3, 0.0)

    # blend weight on the *target* row r = t+1 (row 0 gets alpha=0 -> identity blend)
    alpha3 = jnp.concatenate(
        [jnp.zeros((t, 1, 1), jnp.float32), jnp.abs(impact3)], axis=1)   # [t, S, 1]
    blend3 = alpha3 > threshold

    # ---- optimized states: build full tile in-register, ONE unmasked store -------
    x_prev = jnp.concatenate(
        [jnp.zeros((t, 1, D), jnp.float32), x3[:, :-1, :]], axis=1)      # row 0 unused
    opt_ref[...] = jnp.where(blend3, (1.0 - alpha3) * x3 + alpha3 * x_prev, x3)

    # ---- 4) route scorer on OPTIMIZED states -------------------------------------
    # the first Linear is affine, so blending its pre-activations scores the
    # blended (optimized) states exactly; row 0 passes through (alpha = 0).
    g3 = y3[..., pp + 2 * dp:pp + 2 * dp + d2p] + rs_b1_ref[...]         # [t, S, D2p]
    g_prev = jnp.concatenate(
        [jnp.zeros((t, 1, d2p), jnp.float32), g3[:, :-1, :]], axis=1)
    g_opt = jnp.where(blend3, (1.0 - alpha3) * g3 + alpha3 * g_prev, g3)
    score3 = (jnp.sum(jnp.maximum(g_opt, 0.0) * rs_w2_ref[...],
                      axis=-1, keepdims=True) + rs_b2_ref[...])          # [t, S, 1]

    # ---- per-token scalar outputs: direct sub-ref stores, no output concatenates --
    scal_ref[:, :, 0:1] = rs3
    scal_ref[:, :, 1:2] = score3
    if emit_diag:
        scal_ref[:, :S - 1, 2:3] = bott3              # row S-1 padded with zeros below
        scal_ref[:, :S - 1, 3:4] = impact3
        scal_ref[:, S - 1:, 2:4] = jnp.zeros((t, 1, 2), jnp.float32)
        p_out = pat_refs[0].shape[-1]                 # unpadded num_patterns
        pat_refs[0][...] = ps3[..., :p_out]           # logits only; softmax in wrapper


# --------------------------------------------------------------------------
# pallas_call wrapper: tile sizing, VMEM budget, output gating
# --------------------------------------------------------------------------

def _vmem_limit_bytes():
    try:
        cap = int(getattr(pltpu.get_tpu_info(), "vmem_capacity_bytes", 0))
    except Exception:
        cap = 0
    if cap <= 0:
        cap = 64 << 20                        # conservative (v7x per-TensorCore VMEM)
    return min(cap * 3 // 4, 96 << 20)        # leave headroom below physical


def _pick_bh_tile(bh, per_row_bytes, budget_bytes):
    """Largest divisor of bh that fits the VMEM budget, preferring >=2 grid steps
    so the pipeline overlaps DMA with compute and v7x megacore gets both cores."""
    cap = max(1, budget_bytes // max(per_row_bytes, 1))
    best_multi, best_any = 0, 1
    for div in range(1, bh + 1):
        if bh % div:
            continue
        if div <= cap:
            best_any = div
            if bh // div >= 2:
                best_multi = div
    return best_multi or best_any


def _router_pallas(states_bh, params, *, num_patterns, threshold, with_diag):
    bh, s, d = states_bh.shape
    pp = params["pd_wr"].shape[1]
    dp = params["bd_w2"].shape[1]
    d2p = params["rs_w2"].shape[1]
    c = params["w_in"].shape[1]
    assert c == pp + 2 * dp + d2p

    scal_lanes = 4 if with_diag else 2
    vmem_limit = _vmem_limit_bytes()
    # generous per-bh-row f32 live-set estimate: double-buffered in/out blocks,
    # the packed projection, shifted copies, temporaries, scalar/diagnostic slabs.
    per_row = 4 * s * (6 * d + c + 2 * pp + dp + 3 * d2p + 2 * scal_lanes
                       + (2 * num_patterns if with_diag else 0) + 32)
    bh_tile = _pick_bh_tile(bh, per_row, vmem_limit // 2)
    grid = (bh // bh_tile,)

    def wspec(arr):
        return pl.BlockSpec(arr.shape, lambda i: (0,) * arr.ndim)

    kernel = partial(_router_kernel, pp=pp, dp=dp, d2p=d2p,
                     threshold=float(threshold), emit_diag=with_diag)

    out_shape = [
        jax.ShapeDtypeStruct((bh, s, d), jnp.float32),            # optimized states
        jax.ShapeDtypeStruct((bh, s, scal_lanes), jnp.float32),   # rs|score[|bott|impact]
    ]
    out_specs = [
        pl.BlockSpec((bh_tile, s, d), lambda i: (i, 0, 0)),
        pl.BlockSpec((bh_tile, s, scal_lanes), lambda i: (i, 0, 0)),
    ]
    if with_diag:
        out_shape.append(jax.ShapeDtypeStruct((bh, s, num_patterns), jnp.float32))
        out_specs.append(pl.BlockSpec((bh_tile, s, num_patterns), lambda i: (i, 0, 0)))

    return pl.pallas_call(
        kernel,
        grid=grid,
        out_shape=tuple(out_shape),
        in_specs=[
            pl.BlockSpec((bh_tile, s, d), lambda i: (i, 0, 0)),
            wspec(params["w_in"]), wspec(params["pd_wr"]), wspec(params["pd_mask"]),
            wspec(params["bd_b1"]), wspec(params["bd_w2"]), wspec(params["bd_b2"]),
            wspec(params["rs_b1"]), wspec(params["rs_w2"]), wspec(params["rs_b2"]),
        ],
        out_specs=tuple(out_specs),
        # states block is fully VMEM-resident before its writeback; copy-free when
        # the caller donates `states` or feeds an in-jit intermediate.
        input_output_aliases={0: 0},
        compiler_params=pltpu.CompilerParams(
            dimension_semantics=("parallel",),
            vmem_limit_bytes=int(vmem_limit)),
    )(states_bh, params["w_in"], params["pd_wr"], params["pd_mask"],
      params["bd_b1"], params["bd_w2"], params["bd_b2"],
      params["rs_b1"], params["rs_w2"], params["rs_b2"])


# --------------------------------------------------------------------------
# JAX glue: greedy path + parameter packing
# --------------------------------------------------------------------------

def greedy_path(scores):
    """Greedy masked-argmax path from start index 0 (eval mode).

    The route scores are constant across the reference's sequential loop, so the
    greedy path equals the descending stable-sort order with index 0 forced first;
    ties resolve to the lowest index, matching iterated argmax."""
    # TODO(synk): the 2-layer GRU path_predictor is computed-but-unused in the
    # reference forward (its output never feeds the scoring), so it is elided.
    b, h, s = scores.shape
    masked = scores.at[..., 0].set(-jnp.inf)
    order = jnp.argsort(-masked, axis=-1)
    start = jnp.zeros((b, h, 1), dtype=jnp.int32)
    return jnp.concatenate([start, order[..., :s - 1].astype(jnp.int32)], axis=-1)


def init_params(dim, num_patterns, seed=42):
    d, p = dim, num_patterns
    pp = _round_up(p, 128)            # lane-aligned segment widths
    dp = _round_up(d, 128)
    d2p = _round_up(2 * d, 128)

    key = jax.random.PRNGKey(seed)
    ks = jax.random.split(key, 6)

    def w(k, shape, scale=0.1):
        return jax.random.normal(k, shape, dtype=jnp.float32) * scale

    rs_w1 = w(ks[0], (d, 2 * d))          # route_scorer Linear(dim, 2*dim)
    rs_w2 = w(ks[1], (2 * d, 1))          # route_scorer Linear(2*dim, 1)
    bd_w1 = w(ks[2], (2 * d, d))          # bottleneck_detector Linear(2*dim, dim)
    bd_w2 = w(ks[3], (d, 1))              # bottleneck_detector Linear(dim, 1)
    pd_wp = w(ks[4], (d, p))              # PatternDynamics surrogate projection
    pd_wr = w(ks[5], (p, 1))              # PatternDynamics surrogate readout

    # packed, 128-lane-aligned input projection; padded columns carry zero weight
    w_in = jnp.zeros((d, pp + 2 * dp + d2p), jnp.float32)
    w_in = w_in.at[:, :p].set(pd_wp)
    w_in = w_in.at[:, pp:pp + d].set(bd_w1[:d])
    w_in = w_in.at[:, pp + dp:pp + dp + d].set(bd_w1[d:])
    w_in = w_in.at[:, pp + 2 * dp:pp + 2 * dp + 2 * d].set(rs_w1)

    def lane_row(v, width):               # (k,1) column -> zero-padded (1,width) row
        return jnp.zeros((1, width), jnp.float32).at[0, :v.shape[0]].set(v[:, 0])

    return {
        "w_in": w_in,
        "pd_wr": lane_row(pd_wr, pp),
        "pd_mask": jnp.where(jnp.arange(pp) < p, 0.0, -1e30)[None, :].astype(jnp.float32),
        "bd_b1": jnp.zeros((1, dp), jnp.float32),
        "bd_w2": lane_row(bd_w2, dp),
        "bd_b2": jnp.zeros((1, 1), jnp.float32),
        "rs_b1": jnp.zeros((1, d2p), jnp.float32),
        "rs_w2": lane_row(rs_w2, d2p),
        "rs_b2": jnp.zeros((1, 1), jnp.float32),
    }


def information_router_forward(states, params, *, num_patterns=64,
                               bottleneck_threshold=0.7, return_diagnostics=False):
    b, h, s, d = states.shape
    bh = b * h

    outs = _router_pallas(states.reshape(bh, s, d).astype(jnp.float32), params,
                          num_patterns=num_patterns,
                          threshold=bottleneck_threshold,
                          with_diag=return_diagnostics)
    opt, scal = outs[0], outs[1]

    optimized_states = opt.reshape(b, h, s, d)
    routing_scores = scal[:, :, 0].reshape(b, h, s)
    route_scores = scal[:, :, 1].reshape(b, h, s)
    paths = greedy_path(route_scores)

    results = {
        "states": optimized_states,
        "paths": paths,
        "routing_scores": routing_scores,
    }
    if return_diagnostics:
        pattern_scores = outs[2].reshape(b, h, s, num_patterns)
        results.update({
            "bottlenecks": scal[:, :s - 1, 2].reshape(b, h, s - 1),
            "impact": scal[:, :s - 1, 3].reshape(b, h, s - 1),
            "pattern_scores": pattern_scores,
            "patterns": jax.nn.softmax(pattern_scores, axis=-1),   # cheap fused XLA op
        })
    return results


if __name__ == "__main__":
    B, H, S, D, P = 2, 4, 8, 32, 64          # batch, heads, seq, dim, num_patterns
    key = jax.random.PRNGKey(0)
    states = jax.random.normal(key, (B, H, S, D), dtype=jnp.float32)
    params = init_params(D, P)

    fwd = jax.jit(partial(information_router_forward, num_patterns=P,
                          bottleneck_threshold=0.7, return_diagnostics=True))
    out = fwd(states, params)
    out = jax.tree_util.tree_map(jax.block_until_ready, out)

    # lean (common-path) variant: no diagnostic slabs are even written
    fwd_lean = jax.jit(partial(information_router_forward, num_patterns=P,
                               bottleneck_threshold=0.7, return_diagnostics=False))
    out_lean = fwd_lean(states, params)
    out_lean = jax.tree_util.tree_map(jax.block_until_ready, out_lean)

    assert out["states"].shape == (B, H, S, D)
    assert out["paths"].shape == (B, H, S)
    assert out["routing_scores"].shape == (B, H, S)
    assert out["bottlenecks"].shape == (B, H, S - 1)
    assert out["impact"].shape == (B, H, S - 1)
    assert out["patterns"].shape == (B, H, S, P)
    assert out["pattern_scores"].shape == (B, H, S, P)
    assert bool(jnp.allclose(out["patterns"].sum(-1), 1.0, atol=1e-4))
    # paths must be permutations of [0, S) starting at index 0
    assert bool((out["paths"][..., 0] == 0).all())
    assert bool((jnp.sort(out["paths"], axis=-1) == jnp.arange(S)).all())
    # lean variant agrees with the diagnostics variant on the shared outputs
    assert out_lean["states"].shape == (B, H, S, D)
    assert out_lean["paths"].shape == (B, H, S)
    assert bool(jnp.allclose(out_lean["states"], out["states"]))
    assert bool(jnp.allclose(out_lean["routing_scores"], out["routing_scores"]))
    print("KERNEL_OK")
</pallas_src>

<mosaic_0001>
module attributes {stable_mosaic.version = 11 : i64} {
  func.func @_router_kernel(%arg0: i32, %arg1: memref<4x8x32xf32, #tpu.memory_space<vmem>>, %arg2: memref<32x512xf32, #tpu.memory_space<vmem>>, %arg3: memref<1x128xf32, #tpu.memory_space<vmem>>, %arg4: memref<1x128xf32, #tpu.memory_space<vmem>>, %arg5: memref<1x128xf32, #tpu.memory_space<vmem>>, %arg6: memref<1x128xf32, #tpu.memory_space<vmem>>, %arg7: memref<1x1xf32, #tpu.memory_space<vmem>>, %arg8: memref<1x128xf32, #tpu.memory_space<vmem>>, %arg9: memref<1x128xf32, #tpu.memory_space<vmem>>, %arg10: memref<1x1xf32, #tpu.memory_space<vmem>>, %arg11: memref<4x8x32xf32, #tpu.memory_space<vmem>>, %arg12: memref<4x8x4xf32, #tpu.memory_space<vmem>>, %arg13: memref<4x8x64xf32, #tpu.memory_space<vmem>>) attributes {dimension_semantics = [#tpu.dimension_semantics<parallel>], iteration_bounds = array<i64: 2>, scalar_prefetch = 0 : i64, scratch_operands = 0 : i64, tpu.core_type = #tpu.core_type<tc>, window_params = [{transform_indices = @transform_0, window_bounds = array<i64: 4, 8, 32>}, {pipeline_mode = #tpu.pipeline_mode<synchronous>, transform_indices = @transform_1, window_bounds = array<i64: 32, 512>}, {pipeline_mode = #tpu.pipeline_mode<synchronous>, transform_indices = @transform_2, window_bounds = array<i64: 1, 128>}, {pipeline_mode = #tpu.pipeline_mode<synchronous>, transform_indices = @transform_3, window_bounds = array<i64: 1, 128>}, {pipeline_mode = #tpu.pipeline_mode<synchronous>, transform_indices = @transform_4, window_bounds = array<i64: 1, 128>}, {pipeline_mode = #tpu.pipeline_mode<synchronous>, transform_indices = @transform_5, window_bounds = array<i64: 1, 128>}, {pipeline_mode = #tpu.pipeline_mode<synchronous>, transform_indices = @transform_6, window_bounds = array<i64: 1, 1>}, {pipeline_mode = #tpu.pipeline_mode<synchronous>, transform_indices = @transform_7, window_bounds = array<i64: 1, 128>}, {pipeline_mode = #tpu.pipeline_mode<synchronous>, transform_indices = @transform_8, window_bounds = array<i64: 1, 128>}, {pipeline_mode = #tpu.pipeline_mode<synchronous>, transform_indices = @transform_9, window_bounds = array<i64: 1, 1>}, {transform_indices = @transform_10, window_bounds = array<i64: 4, 8, 32>}, {transform_indices = @transform_11, window_bounds = array<i64: 4, 8, 4>}, {transform_indices = @transform_12, window_bounds = array<i64: 4, 8, 64>}]} {
    %c0 = arith.constant 0 : index
    %c0_0 = arith.constant 0 : index
    %c0_1 = arith.constant 0 : index
    %0 = vector.load %arg1[%c0, %c0_0, %c0_1] : memref<4x8x32xf32, #tpu.memory_space<vmem>>, vector<4x8x32xf32>
    %1 = vector.shape_cast %0 : vector<4x8x32xf32> to vector<32x32xf32>
    %c0_2 = arith.constant 0 : index
    %c0_3 = arith.constant 0 : index
    %2 = vector.load %arg2[%c0_2, %c0_3] : memref<32x512xf32, #tpu.memory_space<vmem>>, vector<32x512xf32>
    %cst = arith.constant dense<0.000000e+00> : vector<32x512xf32>
    %3 = tpu.matmul %1, %2, %cst {dimension_numbers = #tpu.dot_dimension_numbers<[1], [0], [0], [1], [0, 0, 1, 1], [], []>} : vector<32x32xf32>, vector<32x512xf32>, vector<32x512xf32> -> vector<32x512xf32>
    %4 = vector.shape_cast %3 : vector<32x512xf32> to vector<4x8x512xf32>
    %5 = vector.extract_strided_slice %4 {offsets = [0, 0, 0], sizes = [4, 8, 128], strides = [1, 1, 1]} : vector<4x8x512xf32> to vector<4x8x128xf32>
    %c0_4 = arith.constant 0 : index
    %c0_5 = arith.constant 0 : index
    %6 = vector.load %arg4[%c0_4, %c0_5] : memref<1x128xf32, #tpu.memory_space<vmem>>, vector<1x128xf32>
    %7 = vector.shape_cast %6 : vector<1x128xf32> to vector<1x1x128xf32>
    %8 = vector.broadcast %7 : vector<1x1x128xf32> to vector<4x8x128xf32>
    %9 = arith.addf %5, %8 : vector<4x8x128xf32>
    %cst_6 = arith.constant dense<0xFF800000> : vector<4x8xf32>
    %10 = vector.multi_reduction <maximumf>, %9, %cst_6 [2] : vector<4x8x128xf32> to vector<4x8xf32>
    %cst_7 = arith.constant 0xFF800000 : f32
    %11 = vector.broadcast %cst_7 : f32 to vector<4x8xf32>
    %12 = arith.maximumf %11, %10 : vector<4x8xf32>
    %13 = vector.shape_cast %12 : vector<4x8xf32> to vector<4x8x1xf32>
    %14 = vector.broadcast %13 : vector<4x8x1xf32> to vector<4x8x128xf32>
    %15 = arith.subf %9, %14 : vector<4x8x128xf32>
    %16 = math.exp %15 : vector<4x8x128xf32>
    %cst_8 = arith.constant dense<0.000000e+00> : vector<4x8xf32>
    %17 = vector.multi_reduction <add>, %16, %cst_8 [2] : vector<4x8x128xf32> to vector<4x8xf32>
    %18 = vector.shape_cast %17 : vector<4x8xf32> to vector<4x8x1xf32>
    %19 = vector.broadcast %18 : vector<4x8x1xf32> to vector<4x8x128xf32>
    %20 = arith.divf %16, %19 : vector<4x8x128xf32>
    %c0_9 = arith.constant 0 : index
    %c0_10 = arith.constant 0 : index
    %21 = vector.load %arg3[%c0_9, %c0_10] : memref<1x128xf32, #tpu.memory_space<vmem>>, vector<1x128xf32>
    %22 = vector.shape_cast %21 : vector<1x128xf32> to vector<1x1x128xf32>
    %23 = vector.broadcast %22 : vector<1x1x128xf32> to vector<4x8x128xf32>
    %24 = arith.mulf %20, %23 : vector<4x8x128xf32>
    %cst_11 = arith.constant dense<0.000000e+00> : vector<4x8xf32>
    %25 = vector.multi_reduction <add>, %24, %cst_11 [2] : vector<4x8x128xf32> to vector<4x8xf32>
    %26 = vector.shape_cast %25 : vector<4x8xf32> to vector<4x8x1xf32>
    %27 = vector.extract_strided_slice %4 {offsets = [0, 0, 128], sizes = [4, 8, 128], strides = [1, 1, 1]} : vector<4x8x512xf32> to vector<4x8x128xf32>
    %28 = vector.extract_strided_slice %4 {offsets = [0, 0, 256], sizes = [4, 8, 128], strides = [1, 1, 1]} : vector<4x8x512xf32> to vector<4x8x128xf32>
    %29 = vector.extract_strided_slice %27 {offsets = [0, 0, 0], sizes = [4, 7, 128], strides = [1, 1, 1]} : vector<4x8x128xf32> to vector<4x7x128xf32>
    %30 = vector.extract_strided_slice %28 {offsets = [0, 1, 0], sizes = [4, 7, 128], strides = [1, 1, 1]} : vector<4x8x128xf32> to vector<4x7x128xf32>
    %31 = arith.addf %29, %30 : vector<4x7x128xf32>
    %c0_12 = arith.constant 0 : index
    %c0_13 = arith.constant 0 : index
    %32 = vector.load %arg5[%c0_12, %c0_13] : memref<1x128xf32, #tpu.memory_space<vmem>>, vector<1x128xf32>
    %33 = vector.shape_cast %32 : vector<1x128xf32> to vector<1x1x128xf32>
    %34 = vector.broadcast %33 : vector<1x1x128xf32> to vector<4x7x128xf32>
    %35 = arith.addf %31, %34 : vector<4x7x128xf32>
    %cst_14 = arith.constant 0.000000e+00 : f32
    %36 = vector.broadcast %cst_14 : f32 to vector<4x7x128xf32>
    %37 = arith.maximumf %35, %36 : vector<4x7x128xf32>
    %c0_15 = arith.constant 0 : index
    %c0_16 = arith.constant 0 : index
    %38 = vector.load %arg6[%c0_15, %c0_16] : memref<1x128xf32, #tpu.memory_space<vmem>>, vector<1x128xf32>
    %39 = vector.shape_cast %38 : vector<1x128xf32> to vector<1x1x128xf32>
    %40 = vector.broadcast %39 : vector<1x1x128xf32> to vector<4x7x128xf32>
    %41 = arith.mulf %37, %40 : vector<4x7x128xf32>
    %cst_17 = arith.constant dense<0.000000e+00> : vector<4x7xf32>
    %42 = vector.multi_reduction <add>, %41, %cst_17 [2] : vector<4x7x128xf32> to vector<4x7xf32>
    %43 = vector.shape_cast %42 : vector<4x7xf32> to vector<4x7x1xf32>
    %c0_18 = arith.constant 0 : index
    %c0_19 = arith.constant 0 : index
    %44 = vector.load %arg7[%c0_18, %c0_19] : memref<1x1xf32, #tpu.memory_space<vmem>>, vector<1x1xf32>
    %45 = vector.shape_cast %44 : vector<1x1xf32> to vector<1x1x1xf32>
    %46 = vector.broadcast %45 : vector<1x1x1xf32> to vector<4x7x1xf32>
    %47 = arith.addf %43, %46 : vector<4x7x1xf32>
    %48 = arith.negf %47 : vector<4x7x1xf32>
    %49 = math.exp %48 : vector<4x7x1xf32>
    %cst_20 = arith.constant 1.000000e+00 : f32
    %50 = vector.broadcast %cst_20 : f32 to vector<4x7x1xf32>
    %51 = arith.addf %50, %49 : vector<4x7x1xf32>
    %52 = arith.divf %50, %51 : vector<4x7x1xf32>
    %53 = vector.extract_strided_slice %26 {offsets = [0, 1, 0], sizes = [4, 1, 1], strides = [1, 1, 1]} : vector<4x8x1xf32> to vector<4x1x1xf32>
    %54 = vector.extract_strided_slice %26 {offsets = [0, 0, 0], sizes = [4, 1, 1], strides = [1, 1, 1]} : vector<4x8x1xf32> to vector<4x1x1xf32>
    %55 = arith.subf %53, %54 : vector<4x1x1xf32>
    %56 = vector.extract_strided_slice %26 {offsets = [0, 2, 0], sizes = [4, 6, 1], strides = [1, 1, 1]} : vector<4x8x1xf32> to vector<4x6x1xf32>
    %57 = vector.extract_strided_slice %26 {offsets = [0, 0, 0], sizes = [4, 6, 1], strides = [1, 1, 1]} : vector<4x8x1xf32> to vector<4x6x1xf32>
    %58 = arith.subf %56, %57 : vector<4x6x1xf32>
    %cst_21 = arith.constant 5.000000e-01 : f32
    %59 = vector.broadcast %cst_21 : f32 to vector<4x6x1xf32>
    %60 = arith.mulf %58, %59 : vector<4x6x1xf32>
    %61 = tpu.concatenate %55, %60 in 1 : vector<4x1x1xf32>, vector<4x6x1xf32> -> vector<4x7x1xf32>
    %cst_22 = arith.constant 0.699999988 : f32
    %62 = vector.broadcast %cst_22 : f32 to vector<4x7x1xf32>
    %63 = arith.cmpf ogt, %52, %62 : vector<4x7x1xf32>
    %cst_23 = arith.constant 0.000000e+00 : f32
    %64 = vector.broadcast %cst_23 : f32 to vector<4x7x1xf32>
    %65 = arith.select %63, %61, %64 : vector<4x7x1xi1>, vector<4x7x1xf32>
    %cst_24 = arith.constant 0.000000e+00 : f32
    %66 = vector.broadcast %cst_24 : f32 to vector<4x1x1xf32>
    %67 = math.absf %65 : vector<4x7x1xf32>
    %68 = tpu.concatenate %66, %67 in 1 : vector<4x1x1xf32>, vector<4x7x1xf32> -> vector<4x8x1xf32>
    %cst_25 = arith.constant 0.699999988 : f32
    %69 = vector.broadcast %cst_25 : f32 to vector<4x8x1xf32>
    %70 = arith.cmpf ogt, %68, %69 : vector<4x8x1xf32>
    %cst_26 = arith.constant 0.000000e+00 : f32
    %71 = vector.broadcast %cst_26 : f32 to vector<4x1x32xf32>
    %72 = vector.extract_strided_slice %0 {offsets = [0, 0, 0], sizes = [4, 7, 32], strides = [1, 1, 1]} : vector<4x8x32xf32> to vector<4x7x32xf32>
    %73 = tpu.concatenate %71, %72 in 1 : vector<4x1x32xf32>, vector<4x7x32xf32> -> vector<4x8x32xf32>
    %cst_27 = arith.constant 1.000000e+00 : f32
    %74 = vector.broadcast %cst_27 : f32 to vector<4x8x1xf32>
    %75 = arith.subf %74, %68 : vector<4x8x1xf32>
    %76 = vector.broadcast %75 : vector<4x8x1xf32> to vector<4x8x32xf32>
    %77 = arith.mulf %76, %0 : vector<4x8x32xf32>
    %78 = vector.broadcast %68 : vector<4x8x1xf32> to vector<4x8x32xf32>
    %79 = arith.mulf %78, %73 : vector<4x8x32xf32>
    %80 = arith.addf %77, %79 : vector<4x8x32xf32>
    %81 = vector.shape_cast %70 : vector<4x8x1xi1> to vector<4x8x1xi1>
    %82 = vector.broadcast %81 : vector<4x8x1xi1> to vector<4x8x32xi1>
    %83 = arith.select %82, %80, %0 : vector<4x8x32xi1>, vector<4x8x32xf32>
    %c0_28 = arith.constant 0 : index
    %c0_29 = arith.constant 0 : index
    %c0_30 = arith.constant 0 : index
    %84 = vector.load %arg11[%c0_28, %c0_29, %c0_30] : memref<4x8x32xf32, #tpu.memory_space<vmem>>, vector<4x8x32xf32>
    tpu.vector_store %arg11[%c0_28, %c0_29, %c0_30], %83 {strides = array<i32>} : memref<4x8x32xf32, #tpu.memory_space<vmem>>, vector<4x8x32xf32>,
    %85 = vector.extract_strided_slice %4 {offsets = [0, 0, 384], sizes = [4, 8, 128], strides = [1, 1, 1]} : vector<4x8x512xf32> to vector<4x8x128xf32>
    %c0_31 = arith.constant 0 : index
    %c0_32 = arith.constant 0 : index
    %86 = vector.load %arg8[%c0_31, %c0_32] : memref<1x128xf32, #tpu.memory_space<vmem>>, vector<1x128xf32>
    %87 = vector.shape_cast %86 : vector<1x128xf32> to vector<1x1x128xf32>
    %88 = vector.broadcast %87 : vector<1x1x128xf32> to vector<4x8x128xf32>
    %89 = arith.addf %85, %88 : vector<4x8x128xf32>
    %cst_33 = arith.constant 0.000000e+00 : f32
    %90 = vector.broadcast %cst_33 : f32 to vector<4x1x128xf32>
    %91 = vector.extract_strided_slice %89 {offsets = [0, 0, 0], sizes = [4, 7, 128], strides = [1, 1, 1]} : vector<4x8x128xf32> to vector<4x7x128xf32>
    %92 = tpu.concatenate %90, %91 in 1 : vector<4x1x128xf32>, vector<4x7x128xf32> -> vector<4x8x128xf32>
    %cst_34 = arith.constant 1.000000e+00 : f32
    %93 = vector.broadcast %cst_34 : f32 to vector<4x8x1xf32>
    %94 = arith.subf %93, %68 : vector<4x8x1xf32>
    %95 = vector.broadcast %94 : vector<4x8x1xf32> to vector<4x8x128xf32>
    %96 = arith.mulf %95, %89 : vector<4x8x128xf32>
    %97 = vector.broadcast %68 : vector<4x8x1xf32> to vector<4x8x128xf32>
    %98 = arith.mulf %97, %92 : vector<4x8x128xf32>
    %99 = arith.addf %96, %98 : vector<4x8x128xf32>
    %100 = vector.shape_cast %70 : vector<4x8x1xi1> to vector<4x8x1xi1>
    %101 = vector.broadcast %100 : vector<4x8x1xi1> to vector<4x8x128xi1>
    %102 = arith.select %101, %99, %89 : vector<4x8x128xi1>, vector<4x8x128xf32>
    %cst_35 = arith.constant 0.000000e+00 : f32
    %103 = vector.broadcast %cst_35 : f32 to vector<4x8x128xf32>
    %104 = arith.maximumf %102, %103 : vector<4x8x128xf32>
    %c0_36 = arith.constant 0 : index
    %c0_37 = arith.constant 0 : index
    %105 = vector.load %arg9[%c0_36, %c0_37] : memref<1x128xf32, #tpu.memory_space<vmem>>, vector<1x128xf32>
    %106 = vector.shape_cast %105 : vector<1x128xf32> to vector<1x1x128xf32>
    %107 = vector.broadcast %106 : vector<1x1x128xf32> to vector<4x8x128xf32>
    %108 = arith.mulf %104, %107 : vector<4x8x128xf32>
    %cst_38 = arith.constant dense<0.000000e+00> : vector<4x8xf32>
    %109 = vector.multi_reduction <add>, %108, %cst_38 [2] : vector<4x8x128xf32> to vector<4x8xf32>
    %110 = vector.shape_cast %109 : vector<4x8xf32> to vector<4x8x1xf32>
    %c0_39 = arith.constant 0 : index
    %c0_40 = arith.constant 0 : index
    %111 = vector.load %arg10[%c0_39, %c0_40] : memref<1x1xf32, #tpu.memory_space<vmem>>, vector<1x1xf32>
    %112 = vector.shape_cast %111 : vector<1x1xf32> to vector<1x1x1xf32>
    %113 = vector.broadcast %112 : vector<1x1x1xf32> to vector<4x8x1xf32>
    %114 = arith.addf %110, %113 : vector<4x8x1xf32>
    %c0_41 = arith.constant 0 : index
    %c0_42 = arith.constant 0 : index
    %c0_43 = arith.constant 0 : index
    %115 = vector.load %arg12[%c0_41, %c0_42, %c0_43] : memref<4x8x4xf32, #tpu.memory_space<vmem>>, vector<4x8x1xf32>
    tpu.vector_store %arg12[%c0_41, %c0_42, %c0_43], %26 {strides = array<i32>} : memref<4x8x4xf32, #tpu.memory_space<vmem>>, vector<4x8x1xf32>,
    %c0_44 = arith.constant 0 : index
    %c0_45 = arith.constant 0 : index
    %c1 = arith.constant 1 : index
    %116 = vector.load %arg12[%c0_44, %c0_45, %c1] : memref<4x8x4xf32, #tpu.memory_space<vmem>>, vector<4x8x1xf32>
    tpu.vector_store %arg12[%c0_44, %c0_45, %c1], %114 {strides = array<i32>} : memref<4x8x4xf32, #tpu.memory_space<vmem>>, vector<4x8x1xf32>,
    %c0_46 = arith.constant 0 : index
    %c0_47 = arith.constant 0 : index
    %c2 = arith.constant 2 : index
    %117 = vector.load %arg12[%c0_46, %c0_47, %c2] : memref<4x8x4xf32, #tpu.memory_space<vmem>>, vector<4x7x1xf32>
    tpu.vector_store %arg12[%c0_46, %c0_47, %c2], %52 {strides = array<i32>} : memref<4x8x4xf32, #tpu.memory_space<vmem>>, vector<4x7x1xf32>,
    %c0_48 = arith.constant 0 : index
    %c0_49 = arith.constant 0 : index
    %c3 = arith.constant 3 : index
    %118 = vector.load %arg12[%c0_48, %c0_49, %c3] : memref<4x8x4xf32, #tpu.memory_space<vmem>>, vector<4x7x1xf32>
    tpu.vector_store %arg12[%c0_48, %c0_49, %c3], %65 {strides = array<i32>} : memref<4x8x4xf32, #tpu.memory_space<vmem>>, vector<4x7x1xf32>,
    %cst_50 = arith.constant 0.000000e+00 : f32
    %119 = vector.broadcast %cst_50 : f32 to vector<4x1x2xf32>
    %c0_51 = arith.constant 0 : index
    %c7 = arith.constant 7 : index
    %c2_52 = arith.constant 2 : index
    %120 = vector.load %arg12[%c0_51, %c7, %c2_52] : memref<4x8x4xf32, #tpu.memory_space<vmem>>, vector<4x1x2xf32>
    tpu.vector_store %arg12[%c0_51, %c7, %c2_52], %119 {strides = array<i32>} : memref<4x8x4xf32, #tpu.memory_space<vmem>>, vector<4x1x2xf32>,
    %121 = vector.extract_strided_slice %5 {offsets = [0, 0, 0], sizes = [4, 8, 64], strides = [1, 1, 1]} : vector<4x8x128xf32> to vector<4x8x64xf32>
    %c0_53 = arith.constant 0 : index
    %c0_54 = arith.constant 0 : index
    %c0_55 = arith.constant 0 : index
    %122 = vector.load %arg13[%c0_53, %c0_54, %c0_55] : memref<4x8x64xf32, #tpu.memory_space<vmem>>, vector<4x8x64xf32>
    tpu.vector_store %arg13[%c0_53, %c0_54, %c0_55], %121 {strides = array<i32>} : memref<4x8x64xf32, #tpu.memory_space<vmem>>, vector<4x8x64xf32>,
    return
  }
  func.func @transform_0(%arg0: i32) -> (i32, i32, i32) {
    %c0_i32 = arith.constant 0 : i32
    %c0_i32_0 = arith.constant 0 : i32
    %c0_i32_1 = arith.constant 0 : i32
    return %arg0, %c0_i32, %c0_i32_0 : i32, i32, i32
  }
  func.func @transform_1(%arg0: i32) -> (i32, i32) {
    %c0_i32 = arith.constant 0 : i32
    %c0_i32_0 = arith.constant 0 : i32
    %c0_i32_1 = arith.constant 0 : i32
    return %c0_i32, %c0_i32_0 : i32, i32
  }
  func.func @transform_2(%arg0: i32) -> (i32, i32) {
    %c0_i32 = arith.constant 0 : i32
    %c0_i32_0 = arith.constant 0 : i32
    %c0_i32_1 = arith.constant 0 : i32
    return %c0_i32, %c0_i32_0 : i32, i32
  }
  func.func @transform_3(%arg0: i32) -> (i32, i32) {
    %c0_i32 = arith.constant 0 : i32
    %c0_i32_0 = arith.constant 0 : i32
    %c0_i32_1 = arith.constant 0 : i32
    return %c0_i32, %c0_i32_0 : i32, i32
  }
  func.func @transform_4(%arg0: i32) -> (i32, i32) {
    %c0_i32 = arith.constant 0 : i32
    %c0_i32_0 = arith.constant 0 : i32
    %c0_i32_1 = arith.constant 0 : i32
    return %c0_i32, %c0_i32_0 : i32, i32
  }
  func.func @transform_5(%arg0: i32) -> (i32, i32) {
    %c0_i32 = arith.constant 0 : i32
    %c0_i32_0 = arith.constant 0 : i32
    %c0_i32_1 = arith.constant 0 : i32
    return %c0_i32, %c0_i32_0 : i32, i32
  }
  func.func @transform_6(%arg0: i32) -> (i32, i32) {
    %c0_i32 = arith.constant 0 : i32
    %c0_i32_0 = arith.constant 0 : i32
    %c0_i32_1 = arith.constant 0 : i32
    return %c0_i32, %c0_i32_0 : i32, i32
  }
  func.func @transform_7(%arg0: i32) -> (i32, i32) {
    %c0_i32 = arith.constant 0 : i32
    %c0_i32_0 = arith.constant 0 : i32
    %c0_i32_1 = arith.constant 0 : i32
    return %c0_i32, %c0_i32_0 : i32, i32
  }
  func.func @transform_8(%arg0: i32) -> (i32, i32) {
    %c0_i32 = arith.constant 0 : i32
    %c0_i32_0 = arith.constant 0 : i32
    %c0_i32_1 = arith.constant 0 : i32
    return %c0_i32, %c0_i32_0 : i32, i32
  }
  func.func @transform_9(%arg0: i32) -> (i32, i32) {
    %c0_i32 = arith.constant 0 : i32
    %c0_i32_0 = arith.constant 0 : i32
    %c0_i32_1 = arith.constant 0 : i32
    return %c0_i32, %c0_i32_0 : i32, i32
  }
  func.func @transform_10(%arg0: i32) -> (i32, i32, i32) {
    %c0_i32 = arith.constant 0 : i32
    %c0_i32_0 = arith.constant 0 : i32
    %c0_i32_1 = arith.constant 0 : i32
    return %arg0, %c0_i32, %c0_i32_0 : i32, i32, i32
  }
  func.func @transform_11(%arg0: i32) -> (i32, i32, i32) {
    %c0_i32 = arith.constant 0 : i32
    %c0_i32_0 = arith.constant 0 : i32
    %c0_i32_1 = arith.constant 0 : i32
    return %arg0, %c0_i32, %c0_i32_0 : i32, i32, i32
  }
  func.func @transform_12(%arg0: i32) -> (i32, i32, i32) {
    %c0_i32 = arith.constant 0 : i32
    %c0_i32_0 = arith.constant 0 : i32
    %c0_i32_1 = arith.constant 0 : i32
    return %arg0, %c0_i32, %c0_i32_0 : i32, i32, i32
  }
}

</mosaic_0001>

<llo_original>
// kernel: neg.1
$region0: #{neg.1}
  #allocation0 [shape = 's32[1]{0}', space=sflag, size = 0x4, scoped, tag = 'scoped memory for neg.1']
  %s0 = inlined_call_operand.vmem [shape: f32[2,4,8], index: 0, kind: input, shape index: {}]
  %s1 = inlined_call_operand.vmem [shape: f32[2,4,8], index: 1, kind: output, shape index: {}]
  %v2 = vld [vmem:[%s0] sm:$0xff]
  %3 = xla_tuple %v2
  %4 = xla_tuple %3
  %v5 = vxor.u32 %v2, 2147483648
  %6 = xla_tuple %v5
  %7 = vst [vmem:[%s1] sm:$0xff] %v5
  %s8 = scalar_lea.vmem %s0, 8
  %v9 = vld [vmem:[%s8] sm:$0xff]
  %10 = xla_tuple %v9
  %11 = xla_tuple %10
  %v12 = vxor.u32 %v9, 2147483648
  %13 = xla_tuple %v12
  %s14 = scalar_lea.vmem %s1, 8
  %15 = vst [vmem:[%s14] sm:$0xff] %v12

// kernel: information_router_forward.1
$region0: #{information_router_forward.1}
  #allocation0 [shape = 'u32[]', space=smem, size = 0x4, offset = 0x4, fixed_abs, tag = 'smem constant byte address 0x4 - core index']
  #allocation1 [shape = 'u32[144,128]{1,0:T(1,128)}', space=vmem, size = 0x12000, scoped, tag = 'internal scratch']
  #allocation2 [shape = 'f32[1,1]{1,0:T(1,128)S(1)}', space=vmem, size = 0x200, scoped, tag = 'scoped memory for information_router_forward.1']
  #allocation3 [shape = 'f32[1,1]{1,0:T(1,128)S(1)}', space=vmem, size = 0x200, scoped, tag = 'scoped memory for information_router_forward.1']
  %s0 = inlined_call_operand.vmem [shape: f32[8,8,32], index: 0, kind: input, shape index: {}, may-alias: {0,10}]
  %s1 = inlined_call_operand.hbm [shape: f32[32,512], index: 1, kind: input, shape index: {}]
  %s2 = inlined_call_operand.vmem [shape: f32[1,128], index: 2, kind: input, shape index: {}]
  %s3 = inlined_call_operand.vmem [shape: f32[1,128], index: 3, kind: input, shape index: {}]
  %s4 = inlined_call_operand.vmem [shape: f32[1,128], index: 4, kind: input, shape index: {}]
  %s5 = inlined_call_operand.vmem [shape: f32[1,128], index: 5, kind: input, shape index: {}]
  %s6 = inlined_call_operand.<no memory space> [shape: f32[1,1], index: 6, kind: input, shape index: {}]
  %s7 = inlined_call_operand.vmem [shape: f32[1,128], index: 7, kind: input, shape index: {}]
  %s8 = inlined_call_operand.vmem [shape: f32[1,128], index: 8, kind: input, shape index: {}]
  %s9 = inlined_call_operand.<no memory space> [shape: f32[1,1], index: 9, kind: input, shape index: {}]
  %s10 = inlined_call_operand.vmem [shape: f32[8,8,32], index: 10, kind: output, shape index: {0}, may-alias: {0,10}]
  %s11 = inlined_call_operand.vmem [shape: f32[8,8,4], index: 11, kind: output, shape index: {1}]
  %s12 = inlined_call_operand.vmem [shape: f32[8,8,64], index: 12, kind: output, shape index: {2}]
  %13 = xla_tuple %s10, %s11, %s12
  %s14 = sld [smem:[#allocation0]]
  $region93: #{information_router_forward.1} parent=0
    _
  %s16 = ssub.s32 1, %s14
  %s17 = scalar_select 0, %s16, %s14
  %v18 = vstv %s6
  %19 = vst [vmem:[#allocation2] sm:$0x1] %v18
  %v20 = vstv %s9
  %21 = vst [vmem:[#allocation3] sm:$0x1] %v20
  $region1: #{information_router_forward.1} parent=0
    #allocation4 [shape = 'u8[65536]{0}', space=vmem, size = 0x10000, scoped, tag = 'input window, operand 1, single buffered']
    #allocation5 [shape = 's32[2]{0}', space=sflag, size = 0x8, scoped, tag = 'scoped memory for information_router_forward.1']
    %22 = vsyncpa [#allocation5], 0
    loop: start=0, step=1, limit=4
    $region2: #{information_router_forward.1} parent=1 // loop_pre_header
      _
    $region3: #{information_router_forward.1} parent=1 // loop_header
      %s24 = sphi 0, %s28
      %p25 = scmp.ge.s32.totalorder %s24, 4
      %s34 = sphi 0, %s36
      %s37 = sphi 0, %s34
      %s38 = sphi 0, %s37
      %s54 = sphi 0, %s38
      %s58 = sphi 0, %s58
      %s60 = sphi 0, %s58
      %s61 = sphi 0, %s60
      %s75 = sphi 0, %s61
      %s79 = sphi 0, %s79
      %s81 = sphi 0, %s79
      %s82 = sphi 0, %s81
      %s96 = sphi 0, %s82
      %s100 = sphi 0, %s100
      %s102 = sphi 0, %s100
      %s103 = sphi 0, %s102
      %s117 = sphi 0, %s103
      %s121 = sphi 0, %s121
      %s123 = sphi 0, %s121
      %s124 = sphi 0, %s123
      %s138 = sphi 0, %s124
      %s142 = sphi 0, %s142
      %s144 = sphi 0, %s142
      %s145 = sphi 0, %s144
      %s159 = sphi 0, %s145
      %s163 = sphi 0, %s163
      %s165 = sphi 0, %s163
      %s166 = sphi 0, %s165
      %s180 = sphi 0, %s166
      %s184 = sphi 0, %s184
      %s186 = sphi 0, %s184
      %s187 = sphi 0, %s186
      %s201 = sphi 0, %s187
      %s205 = sphi 0, %s205
      %s207 = sphi 0, %s205
      %s208 = sphi 0, %s207
      %s222 = sphi 0, %s208
      %s226 = sphi 0, %s226
      %s228 = sphi 0, %s226
      %s229 = sphi 0, %s228
      %s243 = sphi 0, %s229
      %s249 = sphi 0, %s251
      %s252 = sphi 0, %s249
      %s253 = sphi 0, %s252
      %s269 = sphi 0, %s253
      %s275 = sphi 0, %s277
      %s278 = sphi 0, %s275
      %s279 = sphi 0, %s278
      %s295 = sphi 0, %s279
      %s301 = sphi 0, %s303
      %s304 = sphi 0, %s301
      %s305 = sphi 0, %s304
      %s321 = sphi 0, %s305
    $region4: #{information_router_forward.1} parent=1 // loop_header_branch
      %27 = sbr.rel (%p25) target = $region8
    $region5: #{information_router_forward.1} parent=1 // loop_body
      %s29 = ssub.s32 %s24, 1
      %s30 = ssub.s32 %s24, 2
      %s31 = sadd.s32 %s24, 1
      %s32 = ssub.s32 %s24, %s31
      %p33 = scmp.eq.s32.totalorder %s32, 0
      %s35 = sadd.s32 %s34, 1
      %s36 = scalar_select %p33, %s34, %s35
      %p39 = pneg %p33
      %p40 = scmp.eq.s32.totalorder %s24, 1
      %p41 = por %p39, %p40
      %p42 = scmp.ne.s32.totalorder %s34, %s37
      %p43 = scmp.eq.s32.totalorder %s24, 0
      %p44 = por %p42, %p43
      %p45 = scmp.ne.s32.totalorder %s34, %s37
      %p46 = scmp.eq.s32.totalorder %s29, 1
      %p47 = por %p45, %p46
      %p48 = scmp.ne.s32.totalorder %s37, %s38
      %p49 = scmp.eq.s32.totalorder %s29, 0
      %p50 = por %p48, %p49
      %p51 = scmp.ne.s32.totalorder %s37, %s38
      %p52 = scmp.eq.s32.totalorder %s30, 1
      %p53 = por %p51, %p52
      %p55 = scmp.ne.s32.totalorder %s38, %s54
      %p56 = scmp.eq.s32.totalorder %s30, 0
      %p57 = por %p55, %p56
      %s59 = sadd.s32 %s58, 1
      %p62 = scmp.eq.s32.totalorder %s24, 1
      %p63 = scmp.ne.s32.totalorder %s58, %s60
      %p64 = scmp.eq.s32.totalorder %s24, 0
      %p65 = por %p63, %p64
      %p66 = scmp.ne.s32.totalorder %s58, %s60
      %p67 = scmp.eq.s32.totalorder %s29, 1
      %p68 = por %p66, %p67
      %p69 = scmp.ne.s32.totalorder %s60, %s61
      %p70 = scmp.eq.s32.totalorder %s29, 0
      %p71 = por %p69, %p70
      %p72 = scmp.ne.s32.totalorder %s60, %s61
      %p73 = scmp.eq.s32.totalorder %s30, 1
      %p74 = por %p72, %p73
      %p76 = scmp.ne.s32.totalorder %s61, %s75
      %p77 = scmp.eq.s32.totalorder %s30, 0
      %p78 = por %p76, %p77
      %s80 = sadd.s32 %s79, 1
      %p83 = scmp.eq.s32.totalorder %s24, 1
      %p84 = scmp.ne.s32.totalorder %s79, %s81
      %p85 = scmp.eq.s32.totalorder %s24, 0
      %p86 = por %p84, %p85
      %p87 = scmp.ne.s32.totalorder %s79, %s81
      %p88 = scmp.eq.s32.totalorder %s29, 1
      %p89 = por %p87, %p88
      %p90 = scmp.ne.s32.totalorder %s81, %s82
      %p91 = scmp.eq.s32.totalorder %s29, 0
      %p92 = por %p90, %p91
      %p93 = scmp.ne.s32.totalorder %s81, %s82
      %p94 = scmp.eq.s32.totalorder %s30, 1
      %p95 = por %p93, %p94
      %p97 = scmp.ne.s32.totalorder %s82, %s96
      %p98 = scmp.eq.s32.totalorder %s30, 0
      %p99 = por %p97, %p98
      %s101 = sadd.s32 %s100, 1
      %p104 = scmp.eq.s32.totalorder %s24, 1
      %p105 = scmp.ne.s32.totalorder %s100, %s102
      %p106 = scmp.eq.s32.totalorder %s24, 0
      %p107 = por %p105, %p106
      %p108 = scmp.ne.s32.totalorder %s100, %s102
      %p109 = scmp.eq.s32.totalorder %s29, 1
      %p110 = por %p108, %p109
      %p111 = scmp.ne.s32.totalorder %s102, %s103
      %p112 = scmp.eq.s32.totalorder %s29, 0
      %p113 = por %p111, %p112
      %p114 = scmp.ne.s32.totalorder %s102, %s103
      %p115 = scmp.eq.s32.totalorder %s30, 1
      %p116 = por %p114, %p115
      %p118 = scmp.ne.s32.totalorder %s103, %s117
      %p119 = scmp.eq.s32.totalorder %s30, 0
      %p120 = por %p118, %p119
      %s122 = sadd.s32 %s121, 1
      %p125 = scmp.eq.s32.totalorder %s24, 1
      %p126 = scmp.ne.s32.totalorder %s121, %s123
      %p127 = scmp.eq.s32.totalorder %s24, 0
      %p128 = por %p126, %p127
      %p129 = scmp.ne.s32.totalorder %s121, %s123
      %p130 = scmp.eq.s32.totalorder %s29, 1
      %p131 = por %p129, %p130
      %p132 = scmp.ne.s32.totalorder %s123, %s124
      %p133 = scmp.eq.s32.totalorder %s29, 0
      %p134 = por %p132, %p133
      %p135 = scmp.ne.s32.totalorder %s123, %s124
      %p136 = scmp.eq.s32.totalorder %s30, 1
      %p137 = por %p135, %p136
      %p139 = scmp.ne.s32.totalorder %s124, %s138
      %p140 = scmp.eq.s32.totalorder %s30, 0
      %p141 = por %p139, %p140
      %s143 = sadd.s32 %s142, 1
      %p146 = scmp.eq.s32.totalorder %s24, 1
      %p147 = scmp.ne.s32.totalorder %s142, %s144
      %p148 = scmp.eq.s32.totalorder %s24, 0
      %p149 = por %p147, %p148
      %p150 = scmp.ne.s32.totalorder %s142, %s144
      %p151 = scmp.eq.s32.totalorder %s29, 1
      %p152 = por %p150, %p151
      %p153 = scmp.ne.s32.totalorder %s144, %s145
      %p154 = scmp.eq.s32.totalorder %s29, 0
      %p155 = por %p153, %p154
      %p156 = scmp.ne.s32.totalorder %s144, %s145
      %p157 = scmp.eq.s32.totalorder %s30, 1
      %p158 = por %p156, %p157
      %p160 = scmp.ne.s32.totalorder %s145, %s159
      %p161 = scmp.eq.s32.totalorder %s30, 0
      %p162 = por %p160, %p161
      %s164 = sadd.s32 %s163, 1
      %p167 = scmp.eq.s32.totalorder %s24, 1
      %p168 = scmp.ne.s32.totalorder %s163, %s165
      %p169 = scmp.eq.s32.totalorder %s24, 0
      %p170 = por %p168, %p169
      %p171 = scmp.ne.s32.totalorder %s163, %s165
      %p172 = scmp.eq.s32.totalorder %s29, 1
      %p173 = por %p171, %p172
      %p174 = scmp.ne.s32.totalorder %s165, %s166
      %p175 = scmp.eq.s32.totalorder %s29, 0
      %p176 = por %p174, %p175
      %p177 = scmp.ne.s32.totalorder %s165, %s166
      %p178 = scmp.eq.s32.totalorder %s30, 1
      %p179 = por %p177, %p178
      %p181 = scmp.ne.s32.totalorder %s166, %s180
      %p182 = scmp.eq.s32.totalorder %s30, 0
      %p183 = por %p181, %p182
      %s185 = sadd.s32 %s184, 1
      %p188 = scmp.eq.s32.totalorder %s24, 1
      %p189 = scmp.ne.s32.totalorder %s184, %s186
      %p190 = scmp.eq.s32.totalorder %s24, 0
      %p191 = por %p189, %p190
      %p192 = scmp.ne.s32.totalorder %s184, %s186
      %p193 = scmp.eq.s32.totalorder %s29, 1
      %p194 = por %p192, %p193
      %p195 = scmp.ne.s32.totalorder %s186, %s187
      %p196 = scmp.eq.s32.totalorder %s29, 0
      %p197 = por %p195, %p196
      %p198 = scmp.ne.s32.totalorder %s186, %s187
      %p199 = scmp.eq.s32.totalorder %s30, 1
      %p200 = por %p198, %p199
      %p202 = scmp.ne.s32.totalorder %s187, %s201
      %p203 = scmp.eq.s32.totalorder %s30, 0
      %p204 = por %p202, %p203
      %s206 = sadd.s32 %s205, 1
      %p209 = scmp.eq.s32.totalorder %s24, 1
      %p210 = scmp.ne.s32.totalorder %s205, %s207
      %p211 = scmp.eq.s32.totalorder %s24, 0
      %p212 = por %p210, %p211
      %p213 = scmp.ne.s32.totalorder %s205, %s207
      %p214 = scmp.eq.s32.totalorder %s29, 1
      %p215 = por %p213, %p214
      %p216 = scmp.ne.s32.totalorder %s207, %s208
      %p217 = scmp.eq.s32.totalorder %s29, 0
      %p218 = por %p216, %p217
      %p219 = scmp.ne.s32.totalorder %s207, %s208
      %p220 = scmp.eq.s32.totalorder %s30, 1
      %p221 = por %p219, %p220
      %p223 = scmp.ne.s32.totalorder %s208, %s222
      %p224 = scmp.eq.s32.totalorder %s30, 0
      %p225 = por %p223, %p224
      %s227 = sadd.s32 %s226, 1
      %p230 = scmp.eq.s32.totalorder %s24, 1
      %p231 = scmp.ne.s32.totalorder %s226, %s228
      %p232 = scmp.eq.s32.totalorder %s24, 0
      %p233 = por %p231, %p232
      %p234 = scmp.ne.s32.totalorder %s226, %s228
      %p235 = scmp.eq.s32.totalorder %s29, 1
      %p236 = por %p234, %p235
      %p237 = scmp.ne.s32.totalorder %s228, %s229
      %p238 = scmp.eq.s32.totalorder %s29, 0
      %p239 = por %p237, %p238
      %p240 = scmp.ne.s32.totalorder %s228, %s229
      %p241 = scmp.eq.s32.totalorder %s30, 1
      %p242 = por %p240, %p241
      %p244 = scmp.ne.s32.totalorder %s229, %s243
      %p245 = scmp.eq.s32.totalorder %s30, 0
      %p246 = por %p244, %p245
      %s247 = ssub.s32 %s24, %s31
      %p248 = scmp.eq.s32.totalorder %s247, 0
      %s250 = sadd.s32 %s249, 1
      %s251 = scalar_select %p248, %s249, %s250
      %p254 = pneg %p248
      %p255 = scmp.eq.s32.totalorder %s24, 1
      %p256 = por %p254, %p255
      %p257 = scmp.ne.s32.totalorder %s249, %s252
      %p258 = scmp.eq.s32.totalorder %s24, 0
      %p259 = por %p257, %p258
      %p260 = scmp.ne.s32.totalorder %s249, %s252
      %p261 = scmp.eq.s32.totalorder %s29, 1
      %p262 = por %p260, %p261
      %p263 = scmp.ne.s32.totalorder %s252, %s253
      %p264 = scmp.eq.s32.totalorder %s29, 0
      %p265 = por %p263, %p264
      %p266 = scmp.ne.s32.totalorder %s252, %s253
      %p267 = scmp.eq.s32.totalorder %s30, 1
      %p268 = por %p266, %p267
      %p270 = scmp.ne.s32.totalorder %s253, %s269
      %p271 = scmp.eq.s32.totalorder %s30, 0
      %p272 = por %p270, %p271
      %s273 = ssub.s32 %s24, %s31
      %p274 = scmp.eq.s32.totalorder %s273, 0
      %s276 = sadd.s32 %s275, 1
      %s277 = scalar_select %p274, %s275, %s276
      %p280 = pneg %p274
      %p281 = scmp.eq.s32.totalorder %s24, 1
      %p282 = por %p280, %p281
      %p283 = scmp.ne.s32.totalorder %s275, %s278
      %p284 = scmp.eq.s32.totalorder %s24, 0
      %p285 = por %p283, %p284
      %p286 = scmp.ne.s32.totalorder %s275, %s278
      %p287 = scmp.eq.s32.totalorder %s29, 1
      %p288 = por %p286, %p287
      %p289 = scmp.ne.s32.totalorder %s278, %s279
      %p290 = scmp.eq.s32.totalorder %s29, 0
      %p291 = por %p289, %p290
      %p292 = scmp.ne.s32.totalorder %s278, %s279
      %p293 = scmp.eq.s32.totalorder %s30, 1
      %p294 = por %p292, %p293
      %p296 = scmp.ne.s32.totalorder %s279, %s295
      %p297 = scmp.eq.s32.totalorder %s30, 0
      %p298 = por %p296, %p297
      %s299 = ssub.s32 %s24, %s31
      %p300 = scmp.eq.s32.totalorder %s299, 0
      %s302 = sadd.s32 %s301, 1
      %s303 = scalar_select %p300, %s301, %s302
      %p306 = pneg %p300
      %p307 = scmp.eq.s32.totalorder %s24, 1
      %p308 = por %p306, %p307
      %p309 = scmp.ne.s32.totalorder %s301, %s304
      %p310 = scmp.eq.s32.totalorder %s24, 0
      %p311 = por %p309, %p310
      %p312 = scmp.ne.s32.totalorder %s301, %s304
      %p313 = scmp.eq.s32.totalorder %s29, 1
      %p314 = por %p312, %p313
      %p315 = scmp.ne.s32.totalorder %s304, %s305
      %p316 = scmp.eq.s32.totalorder %s29, 0
      %p317 = por %p315, %p316
      %p318 = scmp.ne.s32.totalorder %s304, %s305
      %p319 = scmp.eq.s32.totalorder %s30, 1
      %p320 = por %p318, %p319
      %p322 = scmp.ne.s32.totalorder %s305, %s321
      %p323 = scmp.eq.s32.totalorder %s30, 0
      %p324 = por %p322, %p323
      %p325 = scmp.le.s32.totalorder 1, %s24
      %p326 = scmp.lt.s32.totalorder %s24, 3
      %p327 = pnand %p325, %p326
      %p328 = pneg %p327
      // Predicated region
      $region9: #{information_router_forward.1} parent=5 // pred_check
        _
      $region10: #{information_router_forward.1} parent=5 // pred_check_branch
        %330 = sbr.rel (%p327) target = $region12
      $region11: #{information_router_forward.1} parent=5 // pred_region
        %s331 = ssub.s32 %s24, 1
        // Predicated region
        $region13: #{information_router_forward.1} parent=11 // pred_check
          %p332 = pneg %p71
        $region14: #{information_router_forward.1} parent=11 // pred_check_branch
          %334 = sbr.rel (%p332) target = $region16
        $region15: #{information_router_forward.1} parent=11 // pred_region
          %s336 = ssub.s32 2048, 2048
          %337 = vsyncadd [#allocation5], %s336
          %s338 = sshll.u32 [#allocation4], 4
          %s339 = int_to_ptr.vmem [resolvable:$true] %s338
          %344 = dma.hbm_to_vmem [thread:$0]  %s1, 2048, %s339, [#allocation5], 512, 512, 32
        $region16: #{information_router_forward.1} parent=11 // pred_fallthru
          _
        // Predicated region
        $region17: #{information_router_forward.1} parent=11 // pred_check
          %p345 = pneg %p92
        $region18: #{information_router_forward.1} parent=11 // pred_check_branch
          %347 = sbr.rel (%p345) target = $region20
        $region19: #{information_router_forward.1} parent=11 // pred_region
          _
        $region20: #{information_router_forward.1} parent=11 // pred_fallthru
          _
        // Predicated region
        $region21: #{information_router_forward.1} parent=11 // pred_check
          %p348 = pneg %p113
        $region22: #{information_router_forward.1} parent=11 // pred_check_branch
          %350 = sbr.rel (%p348) target = $region24
        $region23: #{information_router_forward.1} parent=11 // pred_region
          _
        $region24: #{information_router_forward.1} parent=11 // pred_fallthru
          _
        // Predicated region
        $region25: #{information_router_forward.1} parent=11 // pred_check
          %p351 = pneg %p134
        $region26: #{information_router_forward.1} parent=11 // pred_check_branch
          %353 = sbr.rel (%p351) target = $region28
        $region27: #{information_router_forward.1} parent=11 // pred_region
          _
        $region28: #{information_router_forward.1} parent=11 // pred_fallthru
          _
        // Predicated region
        $region29: #{information_router_forward.1} parent=11 // pred_check
          %p354 = pneg %p155
        $region30: #{information_router_forward.1} parent=11 // pred_check_branch
          %356 = sbr.rel (%p354) target = $region32
        $region31: #{information_router_forward.1} parent=11 // pred_region
          _
        $region32: #{information_router_forward.1} parent=11 // pred_fallthru
          _
        // Predicated region
        $region33: #{information_router_forward.1} parent=11 // pred_check
          %p357 = pneg %p176
        $region34: #{information_router_forward.1} parent=11 // pred_check_branch
          %359 = sbr.rel (%p357) target = $region36
        $region35: #{information_router_forward.1} parent=11 // pred_region
          _
        $region36: #{information_router_forward.1} parent=11 // pred_fallthru
          _
        // Predicated region
        $region37: #{information_router_forward.1} parent=11 // pred_check
          %p360 = pneg %p197
        $region38: #{information_router_forward.1} parent=11 // pred_check_branch
          %362 = sbr.rel (%p360) target = $region40
        $region39: #{information_router_forward.1} parent=11 // pred_region
          _
        $region40: #{information_router_forward.1} parent=11 // pred_fallthru
          _
        // Predicated region
        $region41: #{information_router_forward.1} parent=11 // pred_check
          %p363 = pneg %p218
        $region42: #{information_router_forward.1} parent=11 // pred_check_branch
          %365 = sbr.rel (%p363) target = $region44
        $region43: #{information_router_forward.1} parent=11 // pred_region
          _
        $region44: #{information_router_forward.1} parent=11 // pred_fallthru
          _
        // Predicated region
        $region45: #{information_router_forward.1} parent=11 // pred_check
          %p366 = pneg %p239
        $region46: #{information_router_forward.1} parent=11 // pred_check_branch
          %368 = sbr.rel (%p366) target = $region48
        $region47: #{information_router_forward.1} parent=11 // pred_region
          _
        $region48: #{information_router_forward.1} parent=11 // pred_fallthru
          _
      $region12: #{information_router_forward.1} parent=5 // pred_fallthru
        _
      %p369 = scmp.lt.s32.totalorder %s24, 2
      // Predicated region
      $region49: #{information_router_forward.1} parent=5 // pred_check
        %p370 = pneg %p369
      $region50: #{information_router_forward.1} parent=5 // pred_check_branch
        %372 = sbr.rel (%p370) target = $region52
      $region51: #{information_router_forward.1} parent=5 // pred_region
        // Predicated region
        $region53: #{information_router_forward.1} parent=51 // pred_check
          %p373 = pneg %p44
        $region54: #{information_router_forward.1} parent=51 // pred_check_branch
          %375 = sbr.rel (%p373) target = $region56
        $region55: #{information_router_forward.1} parent=51 // pred_region
          %s376 = smul.u32 4, %s24
          %p377 = scmp.lt.s32.totalorder %s376, 7
          %s378 = scalar_select %p377, %s376, 7
          %s379 = smul.addr %s378, 8
          %s380 = scalar_lea.vmem %s0, %s379
          %s381 = smul.u32 4, %s24
        $region56: #{information_router_forward.1} parent=51 // pred_fallthru
          _
      $region52: #{information_router_forward.1} parent=5 // pred_fallthru
        _
      %p382 = scmp.le.s32.totalorder 1, %s24
      %p383 = scmp.lt.s32.totalorder %s24, 3
      %p384 = pnand %p382, %p383
      %p385 = pneg %p384
      // Predicated region
      $region57: #{information_router_forward.1} parent=5 // pred_check
        _
      $region58: #{information_router_forward.1} parent=5 // pred_check_branch
        %387 = sbr.rel (%p384) target = $region60
      $region59: #{information_router_forward.1} parent=5 // pred_region
        %s388 = ssub.s32 %s24, 1
        // Predicated region
        $region61: #{information_router_forward.1} parent=59 // pred_check
          %p389 = pneg %p71
        $region62: #{information_router_forward.1} parent=59 // pred_check_branch
          %391 = sbr.rel (%p389) target = $region64
        $region63: #{information_router_forward.1} parent=59 // pred_region
          %392 = dma.done [#allocation5], 2048
        $region64: #{information_router_forward.1} parent=59 // pred_fallthru
          _
        %s393 = smul.u32 4, %s29
        %p394 = scmp.lt.s32.totalorder %s393, 7
        %s395 = scalar_select %p394, %s393, 7
        %s396 = smul.addr %s395, 8
        %s397 = scalar_lea.vmem %s0, %s396
        %p398 = pneg %p50
        %p399 = pneg %p47
        %p400 = pneg %p71
        %p401 = pneg %p68
        %p402 = pneg %p92
        %p403 = pneg %p89
        %p404 = pneg %p113
        %p405 = pneg %p110
        %p406 = pneg %p134
        %p407 = pneg %p131
        %p408 = pneg %p155
        %p409 = pneg %p152
        %p410 = pneg %p176
        %p411 = pneg %p173
        %p412 = pneg %p197
        %p413 = pneg %p194
        %p414 = pneg %p218
        %p415 = pneg %p215
        %p416 = pneg %p239
        %p417 = pneg %p236
        %p418 = pneg %p265
        %p419 = pneg %p262
        %s420 = smul.u32 4, %s29
        %p421 = scmp.lt.s32.totalorder %s420, 7
        %s422 = scalar_select %p421, %s420, 7
        %s423 = smul.addr %s422, 8
        %s424 = scalar_lea.vmem %s10, %s423
        %p425 = pneg %p291
        %p426 = pneg %p288
        %s427 = smul.u32 4, %s29
        %p428 = scmp.lt.s32.totalorder %s427, 7
        %s429 = scalar_select %p428, %s427, 7
        %s430 = smul.addr %s429, 8
        %s431 = scalar_lea.vmem %s11, %s430
        %p432 = pneg %p317
        %p433 = pneg %p314
        %s434 = smul.u32 4, %s29
        %p435 = scmp.lt.s32.totalorder %s434, 7
        %s436 = scalar_select %p435, %s434, 7
        %s437 = smul.addr %s436, 8
        %s438 = scalar_lea.vmem %s12, %s437
        %s439 = smul.u32 4, %s29
        %p440 = scmp.lt.s32.totalorder %s439, 7
        %s441 = scalar_select %p440, %s439, 7
        %s442 = smul.addr %s441, 8
        %s443 = scalar_lea.vmem %s0, %s442
        %s444 = smul.u32 4, %s29
        %s445 = smul.u32 4, %s29
        %p446 = scmp.lt.s32.totalorder %s445, 7
        %s447 = scalar_select %p446, %s445, 7
        %s448 = smul.addr %s447, 8
        %s449 = scalar_lea.vmem %s10, %s448
        %s450 = smul.u32 4, %s29
        %s451 = smul.u32 4, %s29
        %p452 = scmp.lt.s32.totalorder %s451, 7
        %s453 = scalar_select %p452, %s451, 7
        %s454 = smul.addr %s453, 8
        %s455 = scalar_lea.vmem %s11, %s454
        %s456 = smul.u32 4, %s29
        %s457 = smul.u32 4, %s29
        %p458 = scmp.lt.s32.totalorder %s457, 7
        %s459 = scalar_select %p458, %s457, 7
        %s460 = smul.addr %s459, 8
        %s461 = scalar_lea.vmem %s12, %s460
        %s462 = smul.u32 4, %s29
        %v463 = vld [vmem:[%s443] sm:$0xff]
        %v464 = vld [vmem:[%s443 + $0x8] sm:$0xff]
        %v465 = vld [vmem:[%s443 + $0x10] sm:$0xff]
        %v466 = vld [vmem:[%s443 + $0x18] sm:$0xff]
        %v467 = vld [vmem:[#allocation4] sm:$0xff]
        %v468 = vld [vmem:[#allocation4 + $0x8] sm:$0xff]
        %v469 = vld [vmem:[#allocation4 + $0x10] sm:$0xff]
        %v470 = vld [vmem:[#allocation4 + $0x18] sm:$0xff]
        %v471 = vld [vmem:[#allocation4 + $0x20] sm:$0xff]
        %v472 = vld [vmem:[#allocation4 + $0x28] sm:$0xff]
        %v473 = vld [vmem:[#allocation4 + $0x30] sm:$0xff]
        %v474 = vld [vmem:[#allocation4 + $0x38] sm:$0xff]
        %v475 = vld [vmem:[#allocation4 + $0x40] sm:$0xff]
        %v476 = vld [vmem:[#allocation4 + $0x48] sm:$0xff]
        %v477 = vld [vmem:[#allocation4 + $0x50] sm:$0xff]
        %v478 = vld [vmem:[#allocation4 + $0x58] sm:$0xff]
        %v479 = vld [vmem:[#allocation4 + $0x60] sm:$0xff]
        %v480 = vld [vmem:[#allocation4 + $0x68] sm:$0xff]
        %v481 = vld [vmem:[#allocation4 + $0x70] sm:$0xff]
        %v482 = vld [vmem:[#allocation4 + $0x78] sm:$0xff]
        %vm483 = vcmask 261120
        %v485 = vsel %vm483, %v463, 0
        %v488 = vsel %vm483, %v464, 0
        %v491 = vsel %vm483, %v465, 0
        %v494 = vsel %vm483, %v466, 0
        %496 = vmatprep.subr.mxu0 0.0
        %497 = vmatpush1.msra.mxu0 0.0
        %498 = vmatprep.subr.mxu0 0.0
        %499 = vmatpush1.msra.mxu0 0.0
        %500 = vmatprep.subr.mxu0 0.0
        %501 = vmatpush1.msra.mxu0 0.0
        %502 = vmatprep.subr.mxu0 0.0
        %503 = vmatpush1.msra.mxu0 0.0
        %504 = vmatprep.subr.mxu0 0.0
        %505 = vmatpush1.msra.mxu0 0.0
        %506 = vmatprep.subr.mxu0 0.0
        %507 = vmatpush1.msra.mxu0 0.0
        %508 = vmatprep.subr.mxu0 0.0
        %509 = vmatpush1.msra.mxu0 0.0
        %510 = vmatprep.subr.mxu0 0.0
        %511 = vmatpush1.msra.mxu0 0.0
        %512 = vmatprep.subr.mxu0 0.0
        %513 = vmatpush1.msra.mxu0 0.0
        %514 = vmatprep.subr.mxu0 0.0
        %515 = vmatpush1.msra.mxu0 0.0
        %516 = vmatprep.subr.mxu0 0.0
        %517 = vmatpush1.msra.mxu0 0.0
        %518 = vmatprep.subr.mxu0 0.0
        %519 = vmatpush1.msra.mxu0 0.0
        %520 = vmatprep.subr.mxu0 %v480
        %521 = vmatpush1.msra.mxu0 %v479
        %522 = vmatprep.subr.mxu0 %v476
        %523 = vmatpush1.msra.mxu0 %v475
        %524 = vmatprep.subr.mxu0 %v472
        %525 = vmatpush1.msra.mxu0 %v471
        %526 = vmatprep.subr.mxu0 %v468
        %527 = vmatpush1.msra.mxu0 %v467
        %528 = vmatprep.subr.mxu0 0.0
        %529 = vmatpush2.msra.mxu0 0.0
        %530 = vmatprep.subr.mxu0 0.0
        %531 = vmatpush2.msra.mxu0 0.0
        %532 = vmatprep.subr.mxu0 0.0
        %533 = vmatpush2.msra.mxu0 0.0
        %534 = vmatprep.subr.mxu0 0.0
        %535 = vmatpush2.msra.mxu0 0.0
        %536 = vmatprep.subr.mxu0 0.0
        %537 = vmatpush2.msra.mxu0 0.0
        %538 = vmatprep.subr.mxu0 0.0
        %539 = vmatpush2.msra.mxu0 0.0
        %540 = vmatprep.subr.mxu0 0.0
        %541 = vmatpush2.msra.mxu0 0.0
        %542 = vmatprep.subr.mxu0 0.0
        %543 = vmatpush2.msra.mxu0 0.0
        %544 = vmatprep.subr.mxu0 0.0
        %545 = vmatpush2.msra.mxu0 0.0
        %546 = vmatprep.subr.mxu0 0.0
        %547 = vmatpush2.msra.mxu0 0.0
        %548 = vmatprep.subr.mxu0 0.0
        %549 = vmatpush2.msra.mxu0 0.0
        %550 = vmatprep.subr.mxu0 0.0
        %551 = vmatpush2.msra.mxu0 0.0
        %552 = vmatprep.subr.mxu0 0.0
        %553 = vmatpush2.msra.mxu0 0.0
        %554 = vmatprep.subr.mxu0 0.0
        %555 = vmatpush2.msra.mxu0 0.0
        %556 = vmatprep.subr.mxu0 0.0
        %557 = vmatpush2.msra.mxu0 0.0
        %558 = vmatprep.subr.mxu0 0.0
        %559 = vmatpush2.msra.mxu0 0.0
        %560 = vmatprep.mubr.f32.mxu0 0.0
        %561 = vmatmul.mubr.f32.gmra.mxu0 %v485
        %v562 = vpop.f32.mrf.mxu0
        %v563 = vadd.f32 0.0, %v562
        %v564 = vpop.f32.mrf.mxu0
        %v565 = vadd.f32 0.0, %v564
        %566 = vmatprep.mubr.f32.mxu0 0.0
        %567 = vmatmul.mubr.f32.gmra.mxu0 %v488
        %v568 = vpop.f32.mrf.mxu0
        %v569 = vadd.f32 0.0, %v568
        %v570 = vpop.f32.mrf.mxu0
        %v571 = vadd.f32 0.0, %v570
        %572 = vmatprep.mubr.f32.mxu0 0.0
        %573 = vmatmul.mubr.f32.gmra.mxu0 %v491
        %v574 = vpop.f32.mrf.mxu0
        %v575 = vadd.f32 0.0, %v574
        %v576 = vpop.f32.mrf.mxu0
        %v577 = vadd.f32 0.0, %v576
        %578 = vmatprep.mubr.f32.mxu0 0.0
        %579 = vmatmul.mubr.f32.gmra.mxu0 %v494
        %v580 = vpop.f32.mrf.mxu0
        %v581 = vadd.f32 0.0, %v580
        %v582 = vpop.f32.mrf.mxu0
        %v583 = vadd.f32 0.0, %v582
        %584 = vdwg.mxu0
        %585 = vmatprep.subr.mxu0 0.0
        %586 = vmatpush1.msra.mxu0 0.0
        %587 = vmatprep.subr.mxu0 0.0
        %588 = vmatpush1.msra.mxu0 0.0
        %589 = vmatprep.subr.mxu0 0.0
        %590 = vmatpush1.msra.mxu0 0.0
        %591 = vmatprep.subr.mxu0 0.0
        %592 = vmatpush1.msra.mxu0 0.0
        %593 = vmatprep.subr.mxu0 0.0
        %594 = vmatpush1.msra.mxu0 0.0
        %595 = vmatprep.subr.mxu0 0.0
        %596 = vmatpush1.msra.mxu0 0.0
        %597 = vmatprep.subr.mxu0 0.0
        %598 = vmatpush1.msra.mxu0 0.0
        %599 = vmatprep.subr.mxu0 0.0
        %600 = vmatpush1.msra.mxu0 0.0
        %601 = vmatprep.subr.mxu0 0.0
        %602 = vmatpush1.msra.mxu0 0.0
        %603 = vmatprep.subr.mxu0 0.0
        %604 = vmatpush1.msra.mxu0 0.0
        %605 = vmatprep.subr.mxu0 0.0
        %606 = vmatpush1.msra.mxu0 0.0
        %607 = vmatprep.subr.mxu0 0.0
        %608 = vmatpush1.msra.mxu0 0.0
        %609 = vmatprep.subr.mxu0 %v482
        %610 = vmatpush1.msra.mxu0 %v481
        %611 = vmatprep.subr.mxu0 %v478
        %612 = vmatpush1.msra.mxu0 %v477
        %613 = vmatprep.subr.mxu0 %v474
        %614 = vmatpush1.msra.mxu0 %v473
        %615 = vmatprep.subr.mxu0 %v470
        %616 = vmatpush1.msra.mxu0 %v469
        %617 = vmatprep.subr.mxu0 0.0
        %618 = vmatpush2.msra.mxu0 0.0
        %619 = vmatprep.subr.mxu0 0.0
        %620 = vmatpush2.msra.mxu0 0.0
        %621 = vmatprep.subr.mxu0 0.0
        %622 = vmatpush2.msra.mxu0 0.0
        %623 = vmatprep.subr.mxu0 0.0
        %624 = vmatpush2.msra.mxu0 0.0
        %625 = vmatprep.subr.mxu0 0.0
        %626 = vmatpush2.msra.mxu0 0.0
        %627 = vmatprep.subr.mxu0 0.0
        %628 = vmatpush2.msra.mxu0 0.0
        %629 = vmatprep.subr.mxu0 0.0
        %630 = vmatpush2.msra.mxu0 0.0
        %631 = vmatprep.subr.mxu0 0.0
        %632 = vmatpush2.msra.mxu0 0.0
        %633 = vmatprep.subr.mxu0 0.0
        %634 = vmatpush2.msra.mxu0 0.0
        %635 = vmatprep.subr.mxu0 0.0
        %636 = vmatpush2.msra.mxu0 0.0
        %637 = vmatprep.subr.mxu0 0.0
        %638 = vmatpush2.msra.mxu0 0.0
        %639 = vmatprep.subr.mxu0 0.0
        %640 = vmatpush2.msra.mxu0 0.0
        %641 = vmatprep.subr.mxu0 0.0
        %642 = vmatpush2.msra.mxu0 0.0
        %643 = vmatprep.subr.mxu0 0.0
        %644 = vmatpush2.msra.mxu0 0.0
        %645 = vmatprep.subr.mxu0 0.0
        %646 = vmatpush2.msra.mxu0 0.0
        %647 = vmatprep.subr.mxu0 0.0
        %648 = vmatpush2.msra.mxu0 0.0
        %649 = vmatprep.mubr.f32.mxu0 0.0
        %650 = vmatmul.mubr.f32.gmra.mxu0 %v485
        %v651 = vpop.f32.mrf.mxu0
        %v652 = vadd.f32 0.0, %v651
        %v653 = vpop.f32.mrf.mxu0
        %v654 = vadd.f32 0.0, %v653
        %655 = vmatprep.mubr.f32.mxu0 0.0
        %656 = vmatmul.mubr.f32.gmra.mxu0 %v488
        %v657 = vpop.f32.mrf.mxu0
        %v658 = vadd.f32 0.0, %v657
        %v659 = vpop.f32.mrf.mxu0
        %v660 = vadd.f32 0.0, %v659
        %661 = vmatprep.mubr.f32.mxu0 0.0
        %662 = vmatmul.mubr.f32.gmra.mxu0 %v491
        %v663 = vpop.f32.mrf.mxu0
        %v664 = vadd.f32 0.0, %v663
        %v665 = vpop.f32.mrf.mxu0
        %v666 = vadd.f32 0.0, %v665
        %667 = vmatprep.mubr.f32.mxu0 0.0
        %668 = vmatmul.mubr.f32.gmra.mxu0 %v494
        %v669 = vpop.f32.mrf.mxu0
        %v670 = vadd.f32 0.0, %v669
        %v671 = vpop.f32.mrf.mxu0
        %v672 = vadd.f32 0.0, %v671
        %673 = vdwg.mxu0
        %v674 = vld [vmem:[%s3] sm:$0x1]
        %v676 = vlaneseq
        %v677 = vshrl.u32 %v676, 7
        %v678 = vsub.s32 0, %v677
        %v679 = vrot.slane %v674, %v678
        %v681 = vadd.f32 %v563, %v679
        %v682 = vadd.f32 %v569, %v679
        %v683 = vadd.f32 %v575, %v679
        %v684 = vadd.f32 %v581, %v679
        %685 = vmax.xlane.f32.xlu0 %v681
        %v686 = vpop.xlane.xlu0 %685
        %687 = vmax.xlane.f32.xlu0 %v682
        %v688 = vpop.xlane.xlu0 %687
        %689 = vmax.xlane.f32.xlu0 %v683
        %v690 = vpop.xlane.xlu0 %689
        %691 = vmax.xlane.f32.xlu0 %v684
        %v692 = vpop.xlane.xlu0 %691
        %v693 = vsub.f32 %v681, %v686
        %v694 = vsub.f32 %v682, %v688
        %v695 = vsub.f32 %v683, %v690
        %v696 = vsub.f32 %v684, %v692
        %v697 = vmul.f32 %v693, 1.442695
        %v698 = vpow.pop %v697
        %v699 = vmul.f32 %v694, 1.442695
        %v700 = vpow.pop %v699
        %v701 = vmul.f32 %v695, 1.442695
        %v702 = vpow.pop %v701
        %v703 = vmul.f32 %v696, 1.442695
        %v704 = vpow.pop %v703
        %705 = vadd.xlane.f32.xlu0 %v698
        %v706 = vpop.xlane.xlu0 %705
        %707 = vadd.xlane.f32.xlu0 %v700
        %v708 = vpop.xlane.xlu0 %707
        %709 = vadd.xlane.f32.xlu0 %v702
        %v710 = vpop.xlane.xlu0 %709
        %711 = vadd.xlane.f32.xlu0 %v704
        %v712 = vpop.xlane.xlu0 %711
        %v713 = vrcp.pop %v706
        %v714 = vmul.f32 %v698, %v713
        %v715 = vrcp.pop %v708
        %v716 = vmul.f32 %v700, %v715
        %v717 = vrcp.pop %v710
        %v718 = vmul.f32 %v702, %v717
        %v719 = vrcp.pop %v712
        %v720 = vmul.f32 %v704, %v719
        %v721 = vld [vmem:[%s2] sm:$0x1]
        %v723 = vlaneseq
        %v724 = vshrl.u32 %v723, 7
        %v725 = vsub.s32 0, %v724
        %v726 = vrot.slane %v721, %v725
        %v728 = vmul.f32 %v714, %v726
        %v729 = vmul.f32 %v716, %v726
        %v730 = vmul.f32 %v718, %v726
        %v731 = vmul.f32 %v720, %v726
        %732 = vadd.xlane.f32.xlu0 %v728
        %v733 = vpop.xlane.xlu0 %732
        %734 = vadd.xlane.f32.xlu0 %v729
        %v735 = vpop.xlane.xlu0 %734
        %736 = vadd.xlane.f32.xlu0 %v730
        %v737 = vpop.xlane.xlu0 %736
        %738 = vadd.xlane.f32.xlu0 %v731
        %v739 = vpop.xlane.xlu0 %738
        %v744 = vrot.slane %v652, 1
        %v745 = vrot.slane %v658, 1
        %v746 = vrot.slane %v664, 1
        %v747 = vrot.slane %v670, 1
        %v752 = vadd.f32 %v565, %v744
        %v753 = vadd.f32 %v571, %v745
        %v754 = vadd.f32 %v577, %v746
        %v755 = vadd.f32 %v583, %v747
        %v756 = vld [vmem:[%s4] sm:$0x1]
        %v758 = vlaneseq
        %v759 = vshrl.u32 %v758, 7
        %v760 = vsub.s32 0, %v759
        %v761 = vrot.slane %v756, %v760
        %v763 = vadd.f32 %v752, %v761
        %v764 = vadd.f32 %v753, %v761
        %v765 = vadd.f32 %v754, %v761
        %v766 = vadd.f32 %v755, %v761
        %v767 = vmax.f32 %v763, 0.0
        %v768 = vmax.f32 %v764, 0.0
        %v769 = vmax.f32 %v765, 0.0
        %v770 = vmax.f32 %v766, 0.0
        %v771 = vld [vmem:[%s5] sm:$0x1]
        %v773 = vlaneseq
        %v774 = vshrl.u32 %v773, 7
        %v775 = vsub.s32 0, %v774
        %v776 = vrot.slane %v771, %v775
        %v778 = vmul.f32 %v767, %v776
        %v779 = vmul.f32 %v768, %v776
        %v780 = vmul.f32 %v769, %v776
        %v781 = vmul.f32 %v770, %v776
        %vm782 = vcmask 1046528
        %v783 = vsel %vm782, %v778, 0.0
        %784 = vadd.xlane.f32.xlu0 %v783
        %v785 = vpop.xlane.xlu0 %784
        %v786 = vsel %vm782, %v779, 0.0
        %787 = vadd.xlane.f32.xlu0 %v786
        %v788 = vpop.xlane.xlu0 %787
        %v789 = vsel %vm782, %v780, 0.0
        %790 = vadd.xlane.f32.xlu0 %v789
        %v791 = vpop.xlane.xlu0 %790
        %v792 = vsel %vm782, %v781, 0.0
        %793 = vadd.xlane.f32.xlu0 %v792
        %v794 = vpop.xlane.xlu0 %793
        %v795 = vld [vmem:[#allocation2] sm:$0x1]
        %v797 = vlaneseq
        %v798 = vshrl.u32 %v797, 7
        %v799 = vsub.s32 0, %v798
        %v800 = vrot.slane %v795, %v799
        %v802 = vadd.f32 %v785, %v800
        %v803 = vadd.f32 %v788, %v800
        %v804 = vadd.f32 %v791, %v800
        %v805 = vadd.f32 %v794, %v800
        %v806 = vxor.u32 %v802, 2147483648
        %v807 = vxor.u32 %v803, 2147483648
        %v808 = vxor.u32 %v804, 2147483648
        %v809 = vxor.u32 %v805, 2147483648
        %v810 = vmul.f32 %v806, 1.442695
        %v811 = vpow.pop %v810
        %v812 = vmul.f32 %v807, 1.442695
        %v813 = vpow.pop %v812
        %v814 = vmul.f32 %v808, 1.442695
        %v815 = vpow.pop %v814
        %v816 = vmul.f32 %v809, 1.442695
        %v817 = vpow.pop %v816
        %v818 = vadd.f32 %v811, 1.0
        %v819 = vadd.f32 %v813, 1.0
        %v820 = vadd.f32 %v815, 1.0
        %v821 = vadd.f32 %v817, 1.0
        %v822 = vrcp.pop %v818
        %v823 = vmul.f32 1.0, %v822
        %v824 = vrcp.pop %v819
        %v825 = vmul.f32 1.0, %v824
        %v826 = vrcp.pop %v820
        %v827 = vmul.f32 1.0, %v826
        %v828 = vrcp.pop %v821
        %v829 = vmul.f32 1.0, %v828
        %v834 = vrot.slane %v733, 7
        %v835 = vrot.slane %v735, 7
        %v836 = vrot.slane %v737, 7
        %v837 = vrot.slane %v739, 7
        %v842 = vsub.f32 %v733, %v834
        %v843 = vsub.f32 %v735, %v835
        %v844 = vsub.f32 %v737, %v836
        %v845 = vsub.f32 %v739, %v837
        %v846 = vrot.slane %v733, 6
        %v847 = vrot.slane %v735, 6
        %v848 = vrot.slane %v737, 6
        %v849 = vrot.slane %v739, 6
        %v854 = vsub.f32 %v733, %v846
        %v855 = vsub.f32 %v735, %v847
        %v856 = vsub.f32 %v737, %v848
        %v857 = vsub.f32 %v739, %v849
        %v858 = vmul.f32 %v854, 0.5
        %v859 = vmul.f32 %v855, 0.5
        %v860 = vmul.f32 %v856, 0.5
        %v861 = vmul.f32 %v857, 0.5
        %v866 = vrot.slane %v842, 1
        %v867 = vrot.slane %v843, 1
        %v868 = vrot.slane %v844, 1
        %v869 = vrot.slane %v845, 1
        %v878 = vrot.slane %v858, 1
        %v879 = vrot.slane %v859, 1
        %v880 = vrot.slane %v860, 1
        %v881 = vrot.slane %v861, 1
        %vm886 = vcmask 1040384
        %v887 = vsel %vm886, %v866, %v878
        %v888 = vsel %vm886, %v867, %v879
        %v889 = vsel %vm886, %v868, %v880
        %v890 = vsel %vm886, %v869, %v881
        %vm891 = vcmp.gt.f32.partialorder %v823, 0.7
        %vm892 = vcmp.gt.f32.partialorder %v825, 0.7
        %vm893 = vcmp.gt.f32.partialorder %v827, 0.7
        %vm894 = vcmp.gt.f32.partialorder %v829, 0.7
        %v895 = vsel %vm891, %v887, 0.0
        %v896 = vsel %vm892, %v888, 0.0
        %v897 = vsel %vm893, %v889, 0.0
        %v898 = vsel %vm894, %v890, 0.0
        %v899 = vand.u32 2147483647, %v895
        %v900 = vand.u32 2147483647, %v896
        %v901 = vand.u32 2147483647, %v897
        %v902 = vand.u32 2147483647, %v898
        %v907 = vrot.slane %v899, 7
        %v908 = vrot.slane %v900, 7
        %v909 = vrot.slane %v901, 7
        %v910 = vrot.slane %v902, 7
        %v915 = vsel %vm886, 0.0, %v907
        %v916 = vsel %vm886, 0.0, %v908
        %v917 = vsel %vm886, 0.0, %v909
        %v918 = vsel %vm886, 0.0, %v910
        %vm919 = vcmp.gt.f32.partialorder %v915, 0.7
        %vm920 = vcmp.gt.f32.partialorder %v916, 0.7
        %vm921 = vcmp.gt.f32.partialorder %v917, 0.7
        %vm922 = vcmp.gt.f32.partialorder %v918, 0.7
        %v923 = vrot.slane %v463, 7
        %v924 = vrot.slane %v464, 7
        %v925 = vrot.slane %v465, 7
        %v926 = vrot.slane %v466, 7
        %v931 = vsel %vm886, 0.0, %v923
        %v932 = vsel %vm886, 0.0, %v924
        %v933 = vsel %vm886, 0.0, %v925
        %v934 = vsel %vm886, 0.0, %v926
        %v935 = vsub.f32 1.0, %v915
        %v936 = vsub.f32 1.0, %v916
        %v937 = vsub.f32 1.0, %v917
        %v938 = vsub.f32 1.0, %v918
        %940 = vset.pattern.permute.xlu0 0
        %941 = vperm.xlu0 %940, %v935
        %v942 = vpop.permute.xlu0 %941
        %945 = vset.pattern.permute.xlu0 0
        %946 = vperm.xlu0 %945, %v936
        %v947 = vpop.permute.xlu0 %946
        %950 = vset.pattern.permute.xlu0 0
        %951 = vperm.xlu0 %950, %v937
        %v952 = vpop.permute.xlu0 %951
        %955 = vset.pattern.permute.xlu0 0
        %956 = vperm.xlu0 %955, %v938
        %v957 = vpop.permute.xlu0 %956
        %v959 = vmul.f32 %v942, %v463
        %v960 = vmul.f32 %v947, %v464
        %v961 = vmul.f32 %v952, %v465
        %v962 = vmul.f32 %v957, %v466
        %964 = vset.pattern.permute.xlu0 0
        %965 = vperm.xlu0 %964, %v915
        %v966 = vpop.permute.xlu0 %965
        %969 = vset.pattern.permute.xlu0 0
        %970 = vperm.xlu0 %969, %v916
        %v971 = vpop.permute.xlu0 %970
        %974 = vset.pattern.permute.xlu0 0
        %975 = vperm.xlu0 %974, %v917
        %v976 = vpop.permute.xlu0 %975
        %979 = vset.pattern.permute.xlu0 0
        %980 = vperm.xlu0 %979, %v918
        %v981 = vpop.permute.xlu0 %980
        %v983 = vmul.f32 %v966, %v931
        %v984 = vmul.f32 %v971, %v932
        %v985 = vmul.f32 %v976, %v933
        %v986 = vmul.f32 %v981, %v934
        %v987 = vadd.f32 %v959, %v983
        %v988 = vadd.f32 %v960, %v984
        %v989 = vadd.f32 %v961, %v985
        %v990 = vadd.f32 %v962, %v986
        %v991 = vsel %vm919, 1, 0
        %v992 = vsel %vm920, 1, 0
        %v993 = vsel %vm921, 1, 0
        %v994 = vsel %vm922, 1, 0
        %995 = vset.pattern.permute.xlu0 0
        %996 = vperm.xlu0 %995, %v991
        %v997 = vpop.permute.xlu0 %996
        %998 = vset.pattern.permute.xlu0 0
        %999 = vperm.xlu0 %998, %v992
        %v1000 = vpop.permute.xlu0 %999
        %1001 = vset.pattern.permute.xlu0 0
        %1002 = vperm.xlu0 %1001, %v993
        %v1003 = vpop.permute.xlu0 %1002
        %1004 = vset.pattern.permute.xlu0 0
        %1005 = vperm.xlu0 %1004, %v994
        %v1006 = vpop.permute.xlu0 %1005
        %vm1007 = vcmp.eq.s32.totalorder %v997, 1
        %vm1008 = vcmp.eq.s32.totalorder %v1000, 1
        %vm1009 = vcmp.eq.s32.totalorder %v1003, 1
        %vm1010 = vcmp.eq.s32.totalorder %v1006, 1
        %v1011 = vsel %vm1007, %v987, %v463
        %v1012 = vsel %vm1008, %v988, %v464
        %v1013 = vsel %vm1009, %v989, %v465
        %v1014 = vsel %vm1010, %v990, %v466
        %1015 = vst.msk [vmem:[%s449] sm:$0xff] %vm483, %v1011
        %1016 = vst.msk [vmem:[%s449 + $0x8] sm:$0xff] %vm483, %v1012
        %1017 = vst.msk [vmem:[%s449 + $0x10] sm:$0xff] %vm483, %v1013
        %1018 = vst.msk [vmem:[%s449 + $0x18] sm:$0xff] %vm483, %v1014
        %v1019 = vld [vmem:[%s7] sm:$0x1]
        %v1021 = vlaneseq
        %v1022 = vshrl.u32 %v1021, 7
        %v1023 = vsub.s32 0, %v1022
        %v1024 = vrot.slane %v1019, %v1023
        %v1026 = vadd.f32 %v654, %v1024
        %v1027 = vadd.f32 %v660, %v1024
        %v1028 = vadd.f32 %v666, %v1024
        %v1029 = vadd.f32 %v672, %v1024
        %v1034 = vrot.slane %v1026, 7
        %v1035 = vrot.slane %v1027, 7
        %v1036 = vrot.slane %v1028, 7
        %v1037 = vrot.slane %v1029, 7
        %v1042 = vsel %vm886, 0.0, %v1034
        %v1043 = vsel %vm886, 0.0, %v1035
        %v1044 = vsel %vm886, 0.0, %v1036
        %v1045 = vsel %vm886, 0.0, %v1037
        %v1046 = vmul.f32 %v942, %v1026
        %v1047 = vmul.f32 %v947, %v1027
        %v1048 = vmul.f32 %v952, %v1028
        %v1049 = vmul.f32 %v957, %v1029
        %v1050 = vmul.f32 %v966, %v1042
        %v1051 = vmul.f32 %v971, %v1043
        %v1052 = vmul.f32 %v976, %v1044
        %v1053 = vmul.f32 %v981, %v1045
        %v1054 = vadd.f32 %v1046, %v1050
        %v1055 = vadd.f32 %v1047, %v1051
        %v1056 = vadd.f32 %v1048, %v1052
        %v1057 = vadd.f32 %v1049, %v1053
        %v1058 = vsel %vm1007, %v1054, %v1026
        %v1059 = vsel %vm1008, %v1055, %v1027
        %v1060 = vsel %vm1009, %v1056, %v1028
        %v1061 = vsel %vm1010, %v1057, %v1029
        %v1062 = vmax.f32 %v1058, 0.0
        %v1063 = vmax.f32 %v1059, 0.0
        %v1064 = vmax.f32 %v1060, 0.0
        %v1065 = vmax.f32 %v1061, 0.0
        %v1066 = vld [vmem:[%s8] sm:$0x1]
        %v1068 = vlaneseq
        %v1069 = vshrl.u32 %v1068, 7
        %v1070 = vsub.s32 0, %v1069
        %v1071 = vrot.slane %v1066, %v1070
        %v1073 = vmul.f32 %v1062, %v1071
        %v1074 = vmul.f32 %v1063, %v1071
        %v1075 = vmul.f32 %v1064, %v1071
        %v1076 = vmul.f32 %v1065, %v1071
        %1077 = vadd.xlane.f32.xlu0 %v1073
        %v1078 = vpop.xlane.xlu0 %1077
        %1079 = vadd.xlane.f32.xlu0 %v1074
        %v1080 = vpop.xlane.xlu0 %1079
        %1081 = vadd.xlane.f32.xlu0 %v1075
        %v1082 = vpop.xlane.xlu0 %1081
        %1083 = vadd.xlane.f32.xlu0 %v1076
        %v1084 = vpop.xlane.xlu0 %1083
        %v1085 = vld [vmem:[#allocation3] sm:$0x1]
        %v1087 = vlaneseq
        %v1088 = vshrl.u32 %v1087, 7
        %v1089 = vsub.s32 0, %v1088
        %v1090 = vrot.slane %v1085, %v1089
        %v1092 = vadd.f32 %v1078, %v1090
        %v1093 = vadd.f32 %v1080, %v1090
        %v1094 = vadd.f32 %v1082, %v1090
        %v1095 = vadd.f32 %v1084, %v1090
        %vm1096 = vcmask 7168
        %1097 = vst.msk [vmem:[%s455] sm:$0xff] %vm1096, %v733
        %1098 = vst.msk [vmem:[%s455 + $0x8] sm:$0xff] %vm1096, %v735
        %1099 = vst.msk [vmem:[%s455 + $0x10] sm:$0xff] %vm1096, %v737
        %1100 = vst.msk [vmem:[%s455 + $0x18] sm:$0xff] %vm1096, %v739
        %1105 = vrot.lane.b32.xlu0 %v1092, 1
        %v1106 = vpop.permute.xlu0 %1105
        %1107 = vrot.lane.b32.xlu0 %v1093, 1
        %v1108 = vpop.permute.xlu0 %1107
        %1109 = vrot.lane.b32.xlu0 %v1094, 1
        %v1110 = vpop.permute.xlu0 %1109
        %1111 = vrot.lane.b32.xlu0 %v1095, 1
        %v1112 = vpop.permute.xlu0 %1111
        %vm1117 = vcmask 15368
        %1118 = vst.msk [vmem:[%s455] sm:$0xff] %vm1117, %v1106
        %1119 = vst.msk [vmem:[%s455 + $0x8] sm:$0xff] %vm1117, %v1108
        %1120 = vst.msk [vmem:[%s455 + $0x10] sm:$0xff] %vm1117, %v1110
        %1121 = vst.msk [vmem:[%s455 + $0x18] sm:$0xff] %vm1117, %v1112
        %1126 = vrot.lane.b32.xlu0 %v823, 2
        %v1127 = vpop.permute.xlu0 %1126
        %1128 = vrot.lane.b32.xlu0 %v825, 2
        %v1129 = vpop.permute.xlu0 %1128
        %1130 = vrot.lane.b32.xlu0 %v827, 2
        %v1131 = vpop.permute.xlu0 %1130
        %1132 = vrot.lane.b32.xlu0 %v829, 2
        %v1133 = vpop.permute.xlu0 %1132
        %vm1138 = vcmask 22544
        %1139 = vst.msk [vmem:[%s455] sm:$0x7f] %vm1138, %v1127
        %1140 = vst.msk [vmem:[%s455 + $0x8] sm:$0x7f] %vm1138, %v1129
        %1141 = vst.msk [vmem:[%s455 + $0x10] sm:$0x7f] %vm1138, %v1131
        %1142 = vst.msk [vmem:[%s455 + $0x18] sm:$0x7f] %vm1138, %v1133
        %1147 = vrot.lane.b32.xlu0 %v895, 3
        %v1148 = vpop.permute.xlu0 %1147
        %1149 = vrot.lane.b32.xlu0 %v896, 3
        %v1150 = vpop.permute.xlu0 %1149
        %1151 = vrot.lane.b32.xlu0 %v897, 3
        %v1152 = vpop.permute.xlu0 %1151
        %1153 = vrot.lane.b32.xlu0 %v898, 3
        %v1154 = vpop.permute.xlu0 %1153
        %vm1159 = vcmask 30744
        %1160 = vst.msk [vmem:[%s455] sm:$0x7f] %vm1159, %v1148
        %1161 = vst.msk [vmem:[%s455 + $0x8] sm:$0x7f] %vm1159, %v1150
        %1162 = vst.msk [vmem:[%s455 + $0x10] sm:$0x7f] %vm1159, %v1152
        %1163 = vst.msk [vmem:[%s455 + $0x18] sm:$0x7f] %vm1159, %v1154
        %vm1164 = vcmask 24592
        %1165 = vst.msk [vmem:[%s455 + $0x7] sm:$0x1] %vm1164, 0.0
        %1166 = vst.msk [vmem:[%s455 + $0xf] sm:$0x1] %vm1164, 0.0
        %1167 = vst.msk [vmem:[%s455 + $0x17] sm:$0x1] %vm1164, 0.0
        %1168 = vst.msk [vmem:[%s455 + $0x1f] sm:$0x1] %vm1164, 0.0
        %vm1169 = vcmask 523264
        %1170 = vst.msk [vmem:[%s461] sm:$0xff] %vm1169, %v563
        %1171 = vst.msk [vmem:[%s461 + $0x8] sm:$0xff] %vm1169, %v569
        %1172 = vst.msk [vmem:[%s461 + $0x10] sm:$0xff] %vm1169, %v575
        %1173 = vst.msk [vmem:[%s461 + $0x18] sm:$0xff] %vm1169, %v581
        %s1174 = smul.u32 4, %s29
        %p1175 = scmp.lt.s32.totalorder %s1174, 7
        %s1176 = scalar_select %p1175, %s1174, 7
        %s1177 = smul.addr %s1176, 8
        %s1178 = scalar_lea.vmem %s10, %s1177
        %s1179 = smul.u32 4, %s29
        %p1180 = scmp.lt.s32.totalorder %s1179, 7
        %s1181 = scalar_select %p1180, %s1179, 7
        %s1182 = smul.addr %s1181, 8
        %s1183 = scalar_lea.vmem %s11, %s1182
        %s1184 = smul.u32 4, %s29
        %p1185 = scmp.lt.s32.totalorder %s1184, 7
        %s1186 = scalar_select %p1185, %s1184, 7
        %s1187 = smul.addr %s1186, 8
        %s1188 = scalar_lea.vmem %s12, %s1187
        // Predicated region
        $region65: #{information_router_forward.1} parent=59 // pred_check
          %p1189 = pneg %p262
        $region66: #{information_router_forward.1} parent=59 // pred_check_branch
          %1191 = sbr.rel (%p1189) target = $region68
        $region67: #{information_router_forward.1} parent=59 // pred_region
          %s1192 = smul.u32 4, %s29
        $region68: #{information_router_forward.1} parent=59 // pred_fallthru
          _
        // Predicated region
        $region69: #{information_router_forward.1} parent=59 // pred_check
          %p1193 = pneg %p288
        $region70: #{information_router_forward.1} parent=59 // pred_check_branch
          %1195 = sbr.rel (%p1193) target = $region72
        $region71: #{information_router_forward.1} parent=59 // pred_region
          %s1196 = smul.u32 4, %s29
        $region72: #{information_router_forward.1} parent=59 // pred_fallthru
          _
        // Predicated region
        $region73: #{information_router_forward.1} parent=59 // pred_check
          %p1197 = pneg %p314
        $region74: #{information_router_forward.1} parent=59 // pred_check_branch
          %1199 = sbr.rel (%p1197) target = $region76
        $region75: #{information_router_forward.1} parent=59 // pred_region
          %s1200 = smul.u32 4, %s29
        $region76: #{information_router_forward.1} parent=59 // pred_fallthru
          _
      $region60: #{information_router_forward.1} parent=5 // pred_fallthru
        _
      %p1201 = scmp.le.s32.totalorder 2, %s24
      // Predicated region
      $region77: #{information_router_forward.1} parent=5 // pred_check
        %p1202 = pneg %p1201
      $region78: #{information_router_forward.1} parent=5 // pred_check_branch
        %1204 = sbr.rel (%p1202) target = $region80
      $region79: #{information_router_forward.1} parent=5 // pred_region
        %s1205 = ssub.s32 %s24, 2
        // Predicated region
        $region81: #{information_router_forward.1} parent=79 // pred_check
          %p1206 = pneg %p268
        $region82: #{information_router_forward.1} parent=79 // pred_check_branch
          %1208 = sbr.rel (%p1206) target = $region84
        $region83: #{information_router_forward.1} parent=79 // pred_region
          %s1209 = smul.u32 4, %s30
          %p1210 = scmp.lt.s32.totalorder %s1209, 7
          %s1211 = scalar_select %p1210, %s1209, 7
          %s1212 = smul.addr %s1211, 8
          %s1213 = scalar_lea.vmem %s10, %s1212
        $region84: #{information_router_forward.1} parent=79 // pred_fallthru
          _
        // Predicated region
        $region85: #{information_router_forward.1} parent=79 // pred_check
          %p1214 = pneg %p294
        $region86: #{information_router_forward.1} parent=79 // pred_check_branch
          %1216 = sbr.rel (%p1214) target = $region88
        $region87: #{information_router_forward.1} parent=79 // pred_region
          %s1217 = smul.u32 4, %s30
          %p1218 = scmp.lt.s32.totalorder %s1217, 7
          %s1219 = scalar_select %p1218, %s1217, 7
          %s1220 = smul.addr %s1219, 8
          %s1221 = scalar_lea.vmem %s11, %s1220
        $region88: #{information_router_forward.1} parent=79 // pred_fallthru
          _
        // Predicated region
        $region89: #{information_router_forward.1} parent=79 // pred_check
          %p1222 = pneg %p320
        $region90: #{information_router_forward.1} parent=79 // pred_check_branch
          %1224 = sbr.rel (%p1222) target = $region92
        $region91: #{information_router_forward.1} parent=79 // pred_region
          %s1225 = smul.u32 4, %s30
          %p1226 = scmp.lt.s32.totalorder %s1225, 7
          %s1227 = scalar_select %p1226, %s1225, 7
          %s1228 = smul.addr %s1227, 8
          %s1229 = scalar_lea.vmem %s12, %s1228
        $region92: #{information_router_forward.1} parent=79 // pred_fallthru
          _
      $region80: #{information_router_forward.1} parent=5 // pred_fallthru
        _
    $region6: #{information_router_forward.1} parent=1 // loop_footer
      %s28 = sadd.s32 1, %s24
    $region7: #{information_router_forward.1} parent=1 // loop_footer_branch
      %23 = sbr.rel target = $region3
    $region8: #{information_router_forward.1} parent=1 // loop_exit
      _
    %1230 = vsyncpa [#allocation5], 1
    %s1231 = scalar_lea.sflag [#allocation5], 1
    %1232 = vsyncpa %s1231, 1

</llo_original>
